<compile_context>
chip_gen: v6e
topology: v6e:2x2x1
jax: 0.10.0
libtpu: 0.0.40
codegen_flags: <defaults>
</compile_context>

<pallas_src>
import functools

import jax
import jax.numpy as jnp
import numpy as np
from jax.experimental import pallas as pl
from jax.experimental.pallas import tpu as pltpu


# ----------------------------------------------------------------------------
# Fused kernel: stacked LSTM -> Linear -> Softmax, fully VMEM-resident.
# Refs: [x (T*B, Din)] + [wih_t, whh_t, b] * n_layers + [lin_w_t, lin_b] + [out]
# Weight/bias gate order inside the kernel is [i, f, o, g] (pre-permuted).
# ----------------------------------------------------------------------------
def fused_net_kernel(*refs, T, B, H, n_layers):
    x_ref = refs[0]
    lin_w_ref = refs[1 + 3 * n_layers]
    lin_b_ref = refs[2 + 3 * n_layers]
    o_ref = refs[3 + 3 * n_layers]

    acts = x_ref[...]                        # (T*B, D_in) current layer input

    for layer in range(n_layers):
        wih_t = refs[1 + 3 * layer][...]     # (D_in, 4H)  gate cols [i,f,o,g]
        whh_t = refs[2 + 3 * layer][...]     # (H,   4H)
        bias = refs[3 + 3 * layer][...]      # (1,   4H)   (= b_ih + b_hh)

        # Batched input projection for all time steps in one MXU call.
        xproj = jnp.dot(acts, wih_t,
                        preferred_element_type=jnp.float32) + bias  # (T*B, 4H)

        h = jnp.zeros((B, H), jnp.float32)
        c = jnp.zeros((B, H), jnp.float32)
        hs = []

        # Serial recurrence, fully unrolled (T is small & static).
        # B is a sublane multiple, so every slice below is tile-aligned.
        for t in range(T):
            gates = (xproj[t * B:(t + 1) * B, :]
                     + jnp.dot(h, whh_t,
                               preferred_element_type=jnp.float32))  # (B, 4H)

            # Gate order [i, f, o, g]: sigmoid on 3H lanes, tanh on H lanes.
            sig = jax.nn.sigmoid(gates[:, :3 * H])
            g_g = jnp.tanh(gates[:, 3 * H:])
            i_g = sig[:, 0 * H:1 * H]
            f_g = sig[:, 1 * H:2 * H]
            o_g = sig[:, 2 * H:3 * H]

            c = f_g * c + i_g * g_g
            h = o_g * jnp.tanh(c)
            hs.append(h)

        # Keep activations in vregs (no VMEM scratch round trip).
        acts = jnp.concatenate(hs, axis=0)    # (T*B, H)

    # Linear + Softmax epilogue (exact division for PyTorch parity).
    logits = jnp.dot(acts, lin_w_ref[...],
                     preferred_element_type=jnp.float32) + lin_b_ref[...]
    m = jnp.max(logits, axis=-1, keepdims=True)
    e = jnp.exp(logits - m)
    s = jnp.sum(e, axis=-1, keepdims=True)
    o_ref[...] = (e / s).astype(o_ref.dtype)


def net_forward(x, lstm_params, lin_w_t, lin_b):
    """x: (T, B, D_in); lstm_params: list of (wih_t, whh_t, b) in PyTorch gate
    order [i, f, g, o]; returns softmax probs of shape (T*B, OUT)."""
    T, B, Din = x.shape
    H = lstm_params[0][1].shape[0]
    OUT = lin_w_t.shape[1]
    n_layers = len(lstm_params)

    # Pad batch to a sublane multiple (8): per-step slices become full tiles.
    B_pad = max(8, ((B + 7) // 8) * 8)
    if B_pad != B:
        x = jnp.pad(x, ((0, 0), (0, B_pad - B), (0, 0)))
    x2 = x.reshape(T * B_pad, Din)            # time-major flatten

    # Permute gate columns from PyTorch [i, f, g, o] -> kernel [i, f, o, g].
    def permute_gates(w):
        return jnp.concatenate(
            [w[..., :2 * H], w[..., 3 * H:4 * H], w[..., 2 * H:3 * H]], axis=-1)

    flat_params = []
    for (wih_t, whh_t, b) in lstm_params:
        flat_params += [permute_gates(wih_t), permute_gates(whh_t),
                        permute_gates(b)]

    n_inputs = 1 + len(flat_params) + 2
    in_specs = [pl.BlockSpec(memory_space=pltpu.MemorySpace.VMEM)
                for _ in range(n_inputs)]

    kernel = functools.partial(fused_net_kernel,
                               T=T, B=B_pad, H=H, n_layers=n_layers)

    out_pad = pl.pallas_call(
        kernel,
        out_shape=jax.ShapeDtypeStruct((T * B_pad, OUT), jnp.float32),
        in_specs=in_specs,
        out_specs=pl.BlockSpec(memory_space=pltpu.MemorySpace.VMEM),
    )(x2, *flat_params, lin_w_t, lin_b)

    # Drop the padded batch rows; padded rows never affect real rows.
    return out_pad.reshape(T, B_pad, OUT)[:, :B, :].reshape(T * B, OUT)


# ----------------------------------------------------------------------------
# Pure-JAX reference (PyTorch semantics, gate order [i, f, g, o]).
# ----------------------------------------------------------------------------
def net_reference(x, lstm_params, lin_w_t, lin_b):
    T, B, _ = x.shape
    h_seq = x
    for (wih_t, whh_t, b) in lstm_params:
        H = whh_t.shape[0]
        h = jnp.zeros((B, H), jnp.float32)
        c = jnp.zeros((B, H), jnp.float32)
        outs = []
        for t in range(T):
            gates = h_seq[t] @ wih_t + h @ whh_t + b
            i_g = jax.nn.sigmoid(gates[:, 0 * H:1 * H])
            f_g = jax.nn.sigmoid(gates[:, 1 * H:2 * H])
            g_g = jnp.tanh(gates[:, 2 * H:3 * H])
            o_g = jax.nn.sigmoid(gates[:, 3 * H:4 * H])
            c = f_g * c + i_g * g_g
            h = o_g * jnp.tanh(c)
            outs.append(h)
        h_seq = jnp.stack(outs, axis=0)
    flat = h_seq.reshape(T * B, -1)
    logits = flat @ lin_w_t + lin_b
    return jax.nn.softmax(logits, axis=-1)


def init_params(key, input_size, hidden_size, output_size, num_layer):
    """PyTorch-style uniform(-1/sqrt(H), 1/sqrt(H)) init, deterministic."""
    H = hidden_size
    k = 1.0 / jnp.sqrt(jnp.float32(H))
    lstm_params = []
    d_in = input_size
    for _ in range(num_layer):
        key, k1, k2, k3, k4 = jax.random.split(key, 5)
        w_ih = jax.random.uniform(k1, (4 * H, d_in), jnp.float32, -k, k)
        w_hh = jax.random.uniform(k2, (4 * H, H), jnp.float32, -k, k)
        b_ih = jax.random.uniform(k3, (4 * H,), jnp.float32, -k, k)
        b_hh = jax.random.uniform(k4, (4 * H,), jnp.float32, -k, k)
        lstm_params.append((w_ih.T, w_hh.T, (b_ih + b_hh)[None, :]))
        d_in = H
    key, k5, k6 = jax.random.split(key, 3)
    kl = 1.0 / jnp.sqrt(jnp.float32(H))
    lin_w = jax.random.uniform(k5, (output_size, H), jnp.float32, -kl, kl)
    lin_b = jax.random.uniform(k6, (output_size,), jnp.float32, -kl, kl)
    return lstm_params, lin_w.T, lin_b[None, :]


if __name__ == "__main__":
    # Small shapes consistent with the module: seq=8, batch=4,
    # input_size=16, hidden_size=32, output_size=8, num_layer=2.
    SEQ, BATCH, IN, HID, OUT, NLAYER = 8, 4, 16, 32, 8, 2

    key = jax.random.PRNGKey(0)
    key, kx = jax.random.split(key)
    x = jax.random.normal(kx, (SEQ, BATCH, IN), jnp.float32)

    lstm_params, lin_w_t, lin_b = init_params(key, IN, HID, OUT, NLAYER)

    y = net_forward(x, lstm_params, lin_w_t, lin_b)
    y = jax.block_until_ready(y)

    assert y.shape == (SEQ * BATCH, OUT), y.shape
    # softmax rows sum to 1 (exact division now)
    assert jnp.allclose(jnp.sum(y, axis=-1), 1.0, atol=1e-4)
    # match pure-JAX reference
    y_ref = jax.block_until_ready(net_reference(x, lstm_params, lin_w_t, lin_b))
    np.testing.assert_allclose(np.asarray(y), np.asarray(y_ref),
                               atol=1e-4, rtol=1e-4)
    print("KERNEL_OK")
</pallas_src>

<mosaic_0001>
module attributes {stable_mosaic.version = 11 : i64} {
  func.func @fused_net_kernel(%arg0: memref<64x16xf32, #tpu.memory_space<vmem>>, %arg1: memref<16x128xf32, #tpu.memory_space<vmem>>, %arg2: memref<32x128xf32, #tpu.memory_space<vmem>>, %arg3: memref<1x128xf32, #tpu.memory_space<vmem>>, %arg4: memref<32x128xf32, #tpu.memory_space<vmem>>, %arg5: memref<32x128xf32, #tpu.memory_space<vmem>>, %arg6: memref<1x128xf32, #tpu.memory_space<vmem>>, %arg7: memref<32x8xf32, #tpu.memory_space<vmem>>, %arg8: memref<1x8xf32, #tpu.memory_space<vmem>>, %arg9: memref<64x8xf32, #tpu.memory_space<vmem>>) attributes {dimension_semantics = [], scalar_prefetch = 0 : i64, scratch_operands = 0 : i64, tpu.core_type = #tpu.core_type<tc>} {
    %c0 = arith.constant 0 : index
    %c0_0 = arith.constant 0 : index
    %0 = vector.load %arg0[%c0, %c0_0] : memref<64x16xf32, #tpu.memory_space<vmem>>, vector<64x16xf32>
    %c0_1 = arith.constant 0 : index
    %c0_2 = arith.constant 0 : index
    %1 = vector.load %arg1[%c0_1, %c0_2] : memref<16x128xf32, #tpu.memory_space<vmem>>, vector<16x128xf32>
    %c0_3 = arith.constant 0 : index
    %c0_4 = arith.constant 0 : index
    %2 = vector.load %arg2[%c0_3, %c0_4] : memref<32x128xf32, #tpu.memory_space<vmem>>, vector<32x128xf32>
    %c0_5 = arith.constant 0 : index
    %c0_6 = arith.constant 0 : index
    %3 = vector.load %arg3[%c0_5, %c0_6] : memref<1x128xf32, #tpu.memory_space<vmem>>, vector<1x128xf32>
    %cst = arith.constant dense<0.000000e+00> : vector<64x128xf32>
    %4 = tpu.matmul %0, %1, %cst {dimension_numbers = #tpu.dot_dimension_numbers<[1], [0], [0], [1], [0, 0, 1, 1], [], []>} : vector<64x16xf32>, vector<16x128xf32>, vector<64x128xf32> -> vector<64x128xf32>
    %5 = vector.broadcast %3 : vector<1x128xf32> to vector<64x128xf32>
    %6 = arith.addf %4, %5 : vector<64x128xf32>
    %cst_7 = arith.constant 0.000000e+00 : f32
    %7 = vector.broadcast %cst_7 : f32 to vector<8x32xf32>
    %cst_8 = arith.constant 0.000000e+00 : f32
    %8 = vector.broadcast %cst_8 : f32 to vector<8x32xf32>
    %9 = vector.extract_strided_slice %6 {offsets = [0, 0], sizes = [8, 128], strides = [1, 1]} : vector<64x128xf32> to vector<8x128xf32>
    %cst_9 = arith.constant dense<0.000000e+00> : vector<8x128xf32>
    %10 = tpu.matmul %7, %2, %cst_9 {dimension_numbers = #tpu.dot_dimension_numbers<[1], [0], [0], [1], [0, 0, 1, 1], [], []>} : vector<8x32xf32>, vector<32x128xf32>, vector<8x128xf32> -> vector<8x128xf32>
    %11 = arith.addf %9, %10 : vector<8x128xf32>
    %12 = vector.extract_strided_slice %11 {offsets = [0, 0], sizes = [8, 96], strides = [1, 1]} : vector<8x128xf32> to vector<8x96xf32>
    %13 = arith.negf %12 : vector<8x96xf32>
    %14 = math.exp %13 : vector<8x96xf32>
    %cst_10 = arith.constant 1.000000e+00 : f32
    %15 = vector.broadcast %cst_10 : f32 to vector<8x96xf32>
    %16 = arith.addf %15, %14 : vector<8x96xf32>
    %17 = arith.divf %15, %16 : vector<8x96xf32>
    %18 = vector.extract_strided_slice %11 {offsets = [0, 96], sizes = [8, 32], strides = [1, 1]} : vector<8x128xf32> to vector<8x32xf32>
    %19 = math.tanh %18 : vector<8x32xf32>
    %20 = vector.extract_strided_slice %17 {offsets = [0, 0], sizes = [8, 32], strides = [1, 1]} : vector<8x96xf32> to vector<8x32xf32>
    %21 = vector.extract_strided_slice %17 {offsets = [0, 32], sizes = [8, 32], strides = [1, 1]} : vector<8x96xf32> to vector<8x32xf32>
    %22 = vector.extract_strided_slice %17 {offsets = [0, 64], sizes = [8, 32], strides = [1, 1]} : vector<8x96xf32> to vector<8x32xf32>
    %23 = arith.mulf %21, %8 : vector<8x32xf32>
    %24 = arith.mulf %20, %19 : vector<8x32xf32>
    %25 = arith.addf %23, %24 : vector<8x32xf32>
    %26 = math.tanh %25 : vector<8x32xf32>
    %27 = arith.mulf %22, %26 : vector<8x32xf32>
    %28 = vector.extract_strided_slice %6 {offsets = [8, 0], sizes = [8, 128], strides = [1, 1]} : vector<64x128xf32> to vector<8x128xf32>
    %cst_11 = arith.constant dense<0.000000e+00> : vector<8x128xf32>
    %29 = tpu.matmul %27, %2, %cst_11 {dimension_numbers = #tpu.dot_dimension_numbers<[1], [0], [0], [1], [0, 0, 1, 1], [], []>} : vector<8x32xf32>, vector<32x128xf32>, vector<8x128xf32> -> vector<8x128xf32>
    %30 = arith.addf %28, %29 : vector<8x128xf32>
    %31 = vector.extract_strided_slice %30 {offsets = [0, 0], sizes = [8, 96], strides = [1, 1]} : vector<8x128xf32> to vector<8x96xf32>
    %32 = arith.negf %31 : vector<8x96xf32>
    %33 = math.exp %32 : vector<8x96xf32>
    %cst_12 = arith.constant 1.000000e+00 : f32
    %34 = vector.broadcast %cst_12 : f32 to vector<8x96xf32>
    %35 = arith.addf %34, %33 : vector<8x96xf32>
    %36 = arith.divf %34, %35 : vector<8x96xf32>
    %37 = vector.extract_strided_slice %30 {offsets = [0, 96], sizes = [8, 32], strides = [1, 1]} : vector<8x128xf32> to vector<8x32xf32>
    %38 = math.tanh %37 : vector<8x32xf32>
    %39 = vector.extract_strided_slice %36 {offsets = [0, 0], sizes = [8, 32], strides = [1, 1]} : vector<8x96xf32> to vector<8x32xf32>
    %40 = vector.extract_strided_slice %36 {offsets = [0, 32], sizes = [8, 32], strides = [1, 1]} : vector<8x96xf32> to vector<8x32xf32>
    %41 = vector.extract_strided_slice %36 {offsets = [0, 64], sizes = [8, 32], strides = [1, 1]} : vector<8x96xf32> to vector<8x32xf32>
    %42 = arith.mulf %40, %25 : vector<8x32xf32>
    %43 = arith.mulf %39, %38 : vector<8x32xf32>
    %44 = arith.addf %42, %43 : vector<8x32xf32>
    %45 = math.tanh %44 : vector<8x32xf32>
    %46 = arith.mulf %41, %45 : vector<8x32xf32>
    %47 = vector.extract_strided_slice %6 {offsets = [16, 0], sizes = [8, 128], strides = [1, 1]} : vector<64x128xf32> to vector<8x128xf32>
    %cst_13 = arith.constant dense<0.000000e+00> : vector<8x128xf32>
    %48 = tpu.matmul %46, %2, %cst_13 {dimension_numbers = #tpu.dot_dimension_numbers<[1], [0], [0], [1], [0, 0, 1, 1], [], []>} : vector<8x32xf32>, vector<32x128xf32>, vector<8x128xf32> -> vector<8x128xf32>
    %49 = arith.addf %47, %48 : vector<8x128xf32>
    %50 = vector.extract_strided_slice %49 {offsets = [0, 0], sizes = [8, 96], strides = [1, 1]} : vector<8x128xf32> to vector<8x96xf32>
    %51 = arith.negf %50 : vector<8x96xf32>
    %52 = math.exp %51 : vector<8x96xf32>
    %cst_14 = arith.constant 1.000000e+00 : f32
    %53 = vector.broadcast %cst_14 : f32 to vector<8x96xf32>
    %54 = arith.addf %53, %52 : vector<8x96xf32>
    %55 = arith.divf %53, %54 : vector<8x96xf32>
    %56 = vector.extract_strided_slice %49 {offsets = [0, 96], sizes = [8, 32], strides = [1, 1]} : vector<8x128xf32> to vector<8x32xf32>
    %57 = math.tanh %56 : vector<8x32xf32>
    %58 = vector.extract_strided_slice %55 {offsets = [0, 0], sizes = [8, 32], strides = [1, 1]} : vector<8x96xf32> to vector<8x32xf32>
    %59 = vector.extract_strided_slice %55 {offsets = [0, 32], sizes = [8, 32], strides = [1, 1]} : vector<8x96xf32> to vector<8x32xf32>
    %60 = vector.extract_strided_slice %55 {offsets = [0, 64], sizes = [8, 32], strides = [1, 1]} : vector<8x96xf32> to vector<8x32xf32>
    %61 = arith.mulf %59, %44 : vector<8x32xf32>
    %62 = arith.mulf %58, %57 : vector<8x32xf32>
    %63 = arith.addf %61, %62 : vector<8x32xf32>
    %64 = math.tanh %63 : vector<8x32xf32>
    %65 = arith.mulf %60, %64 : vector<8x32xf32>
    %66 = vector.extract_strided_slice %6 {offsets = [24, 0], sizes = [8, 128], strides = [1, 1]} : vector<64x128xf32> to vector<8x128xf32>
    %cst_15 = arith.constant dense<0.000000e+00> : vector<8x128xf32>
    %67 = tpu.matmul %65, %2, %cst_15 {dimension_numbers = #tpu.dot_dimension_numbers<[1], [0], [0], [1], [0, 0, 1, 1], [], []>} : vector<8x32xf32>, vector<32x128xf32>, vector<8x128xf32> -> vector<8x128xf32>
    %68 = arith.addf %66, %67 : vector<8x128xf32>
    %69 = vector.extract_strided_slice %68 {offsets = [0, 0], sizes = [8, 96], strides = [1, 1]} : vector<8x128xf32> to vector<8x96xf32>
    %70 = arith.negf %69 : vector<8x96xf32>
    %71 = math.exp %70 : vector<8x96xf32>
    %cst_16 = arith.constant 1.000000e+00 : f32
    %72 = vector.broadcast %cst_16 : f32 to vector<8x96xf32>
    %73 = arith.addf %72, %71 : vector<8x96xf32>
    %74 = arith.divf %72, %73 : vector<8x96xf32>
    %75 = vector.extract_strided_slice %68 {offsets = [0, 96], sizes = [8, 32], strides = [1, 1]} : vector<8x128xf32> to vector<8x32xf32>
    %76 = math.tanh %75 : vector<8x32xf32>
    %77 = vector.extract_strided_slice %74 {offsets = [0, 0], sizes = [8, 32], strides = [1, 1]} : vector<8x96xf32> to vector<8x32xf32>
    %78 = vector.extract_strided_slice %74 {offsets = [0, 32], sizes = [8, 32], strides = [1, 1]} : vector<8x96xf32> to vector<8x32xf32>
    %79 = vector.extract_strided_slice %74 {offsets = [0, 64], sizes = [8, 32], strides = [1, 1]} : vector<8x96xf32> to vector<8x32xf32>
    %80 = arith.mulf %78, %63 : vector<8x32xf32>
    %81 = arith.mulf %77, %76 : vector<8x32xf32>
    %82 = arith.addf %80, %81 : vector<8x32xf32>
    %83 = math.tanh %82 : vector<8x32xf32>
    %84 = arith.mulf %79, %83 : vector<8x32xf32>
    %85 = vector.extract_strided_slice %6 {offsets = [32, 0], sizes = [8, 128], strides = [1, 1]} : vector<64x128xf32> to vector<8x128xf32>
    %cst_17 = arith.constant dense<0.000000e+00> : vector<8x128xf32>
    %86 = tpu.matmul %84, %2, %cst_17 {dimension_numbers = #tpu.dot_dimension_numbers<[1], [0], [0], [1], [0, 0, 1, 1], [], []>} : vector<8x32xf32>, vector<32x128xf32>, vector<8x128xf32> -> vector<8x128xf32>
    %87 = arith.addf %85, %86 : vector<8x128xf32>
    %88 = vector.extract_strided_slice %87 {offsets = [0, 0], sizes = [8, 96], strides = [1, 1]} : vector<8x128xf32> to vector<8x96xf32>
    %89 = arith.negf %88 : vector<8x96xf32>
    %90 = math.exp %89 : vector<8x96xf32>
    %cst_18 = arith.constant 1.000000e+00 : f32
    %91 = vector.broadcast %cst_18 : f32 to vector<8x96xf32>
    %92 = arith.addf %91, %90 : vector<8x96xf32>
    %93 = arith.divf %91, %92 : vector<8x96xf32>
    %94 = vector.extract_strided_slice %87 {offsets = [0, 96], sizes = [8, 32], strides = [1, 1]} : vector<8x128xf32> to vector<8x32xf32>
    %95 = math.tanh %94 : vector<8x32xf32>
    %96 = vector.extract_strided_slice %93 {offsets = [0, 0], sizes = [8, 32], strides = [1, 1]} : vector<8x96xf32> to vector<8x32xf32>
    %97 = vector.extract_strided_slice %93 {offsets = [0, 32], sizes = [8, 32], strides = [1, 1]} : vector<8x96xf32> to vector<8x32xf32>
    %98 = vector.extract_strided_slice %93 {offsets = [0, 64], sizes = [8, 32], strides = [1, 1]} : vector<8x96xf32> to vector<8x32xf32>
    %99 = arith.mulf %97, %82 : vector<8x32xf32>
    %100 = arith.mulf %96, %95 : vector<8x32xf32>
    %101 = arith.addf %99, %100 : vector<8x32xf32>
    %102 = math.tanh %101 : vector<8x32xf32>
    %103 = arith.mulf %98, %102 : vector<8x32xf32>
    %104 = vector.extract_strided_slice %6 {offsets = [40, 0], sizes = [8, 128], strides = [1, 1]} : vector<64x128xf32> to vector<8x128xf32>
    %cst_19 = arith.constant dense<0.000000e+00> : vector<8x128xf32>
    %105 = tpu.matmul %103, %2, %cst_19 {dimension_numbers = #tpu.dot_dimension_numbers<[1], [0], [0], [1], [0, 0, 1, 1], [], []>} : vector<8x32xf32>, vector<32x128xf32>, vector<8x128xf32> -> vector<8x128xf32>
    %106 = arith.addf %104, %105 : vector<8x128xf32>
    %107 = vector.extract_strided_slice %106 {offsets = [0, 0], sizes = [8, 96], strides = [1, 1]} : vector<8x128xf32> to vector<8x96xf32>
    %108 = arith.negf %107 : vector<8x96xf32>
    %109 = math.exp %108 : vector<8x96xf32>
    %cst_20 = arith.constant 1.000000e+00 : f32
    %110 = vector.broadcast %cst_20 : f32 to vector<8x96xf32>
    %111 = arith.addf %110, %109 : vector<8x96xf32>
    %112 = arith.divf %110, %111 : vector<8x96xf32>
    %113 = vector.extract_strided_slice %106 {offsets = [0, 96], sizes = [8, 32], strides = [1, 1]} : vector<8x128xf32> to vector<8x32xf32>
    %114 = math.tanh %113 : vector<8x32xf32>
    %115 = vector.extract_strided_slice %112 {offsets = [0, 0], sizes = [8, 32], strides = [1, 1]} : vector<8x96xf32> to vector<8x32xf32>
    %116 = vector.extract_strided_slice %112 {offsets = [0, 32], sizes = [8, 32], strides = [1, 1]} : vector<8x96xf32> to vector<8x32xf32>
    %117 = vector.extract_strided_slice %112 {offsets = [0, 64], sizes = [8, 32], strides = [1, 1]} : vector<8x96xf32> to vector<8x32xf32>
    %118 = arith.mulf %116, %101 : vector<8x32xf32>
    %119 = arith.mulf %115, %114 : vector<8x32xf32>
    %120 = arith.addf %118, %119 : vector<8x32xf32>
    %121 = math.tanh %120 : vector<8x32xf32>
    %122 = arith.mulf %117, %121 : vector<8x32xf32>
    %123 = vector.extract_strided_slice %6 {offsets = [48, 0], sizes = [8, 128], strides = [1, 1]} : vector<64x128xf32> to vector<8x128xf32>
    %cst_21 = arith.constant dense<0.000000e+00> : vector<8x128xf32>
    %124 = tpu.matmul %122, %2, %cst_21 {dimension_numbers = #tpu.dot_dimension_numbers<[1], [0], [0], [1], [0, 0, 1, 1], [], []>} : vector<8x32xf32>, vector<32x128xf32>, vector<8x128xf32> -> vector<8x128xf32>
    %125 = arith.addf %123, %124 : vector<8x128xf32>
    %126 = vector.extract_strided_slice %125 {offsets = [0, 0], sizes = [8, 96], strides = [1, 1]} : vector<8x128xf32> to vector<8x96xf32>
    %127 = arith.negf %126 : vector<8x96xf32>
    %128 = math.exp %127 : vector<8x96xf32>
    %cst_22 = arith.constant 1.000000e+00 : f32
    %129 = vector.broadcast %cst_22 : f32 to vector<8x96xf32>
    %130 = arith.addf %129, %128 : vector<8x96xf32>
    %131 = arith.divf %129, %130 : vector<8x96xf32>
    %132 = vector.extract_strided_slice %125 {offsets = [0, 96], sizes = [8, 32], strides = [1, 1]} : vector<8x128xf32> to vector<8x32xf32>
    %133 = math.tanh %132 : vector<8x32xf32>
    %134 = vector.extract_strided_slice %131 {offsets = [0, 0], sizes = [8, 32], strides = [1, 1]} : vector<8x96xf32> to vector<8x32xf32>
    %135 = vector.extract_strided_slice %131 {offsets = [0, 32], sizes = [8, 32], strides = [1, 1]} : vector<8x96xf32> to vector<8x32xf32>
    %136 = vector.extract_strided_slice %131 {offsets = [0, 64], sizes = [8, 32], strides = [1, 1]} : vector<8x96xf32> to vector<8x32xf32>
    %137 = arith.mulf %135, %120 : vector<8x32xf32>
    %138 = arith.mulf %134, %133 : vector<8x32xf32>
    %139 = arith.addf %137, %138 : vector<8x32xf32>
    %140 = math.tanh %139 : vector<8x32xf32>
    %141 = arith.mulf %136, %140 : vector<8x32xf32>
    %142 = vector.extract_strided_slice %6 {offsets = [56, 0], sizes = [8, 128], strides = [1, 1]} : vector<64x128xf32> to vector<8x128xf32>
    %cst_23 = arith.constant dense<0.000000e+00> : vector<8x128xf32>
    %143 = tpu.matmul %141, %2, %cst_23 {dimension_numbers = #tpu.dot_dimension_numbers<[1], [0], [0], [1], [0, 0, 1, 1], [], []>} : vector<8x32xf32>, vector<32x128xf32>, vector<8x128xf32> -> vector<8x128xf32>
    %144 = arith.addf %142, %143 : vector<8x128xf32>
    %145 = vector.extract_strided_slice %144 {offsets = [0, 0], sizes = [8, 96], strides = [1, 1]} : vector<8x128xf32> to vector<8x96xf32>
    %146 = arith.negf %145 : vector<8x96xf32>
    %147 = math.exp %146 : vector<8x96xf32>
    %cst_24 = arith.constant 1.000000e+00 : f32
    %148 = vector.broadcast %cst_24 : f32 to vector<8x96xf32>
    %149 = arith.addf %148, %147 : vector<8x96xf32>
    %150 = arith.divf %148, %149 : vector<8x96xf32>
    %151 = vector.extract_strided_slice %144 {offsets = [0, 96], sizes = [8, 32], strides = [1, 1]} : vector<8x128xf32> to vector<8x32xf32>
    %152 = math.tanh %151 : vector<8x32xf32>
    %153 = vector.extract_strided_slice %150 {offsets = [0, 0], sizes = [8, 32], strides = [1, 1]} : vector<8x96xf32> to vector<8x32xf32>
    %154 = vector.extract_strided_slice %150 {offsets = [0, 32], sizes = [8, 32], strides = [1, 1]} : vector<8x96xf32> to vector<8x32xf32>
    %155 = vector.extract_strided_slice %150 {offsets = [0, 64], sizes = [8, 32], strides = [1, 1]} : vector<8x96xf32> to vector<8x32xf32>
    %156 = arith.mulf %154, %139 : vector<8x32xf32>
    %157 = arith.mulf %153, %152 : vector<8x32xf32>
    %158 = arith.addf %156, %157 : vector<8x32xf32>
    %159 = math.tanh %158 : vector<8x32xf32>
    %160 = arith.mulf %155, %159 : vector<8x32xf32>
    %161 = tpu.concatenate %27, %46, %65, %84, %103, %122, %141, %160 in 0 : vector<8x32xf32>, vector<8x32xf32>, vector<8x32xf32>, vector<8x32xf32>, vector<8x32xf32>, vector<8x32xf32>, vector<8x32xf32>, vector<8x32xf32> -> vector<64x32xf32>
    %c0_25 = arith.constant 0 : index
    %c0_26 = arith.constant 0 : index
    %162 = vector.load %arg4[%c0_25, %c0_26] : memref<32x128xf32, #tpu.memory_space<vmem>>, vector<32x128xf32>
    %c0_27 = arith.constant 0 : index
    %c0_28 = arith.constant 0 : index
    %163 = vector.load %arg5[%c0_27, %c0_28] : memref<32x128xf32, #tpu.memory_space<vmem>>, vector<32x128xf32>
    %c0_29 = arith.constant 0 : index
    %c0_30 = arith.constant 0 : index
    %164 = vector.load %arg6[%c0_29, %c0_30] : memref<1x128xf32, #tpu.memory_space<vmem>>, vector<1x128xf32>
    %cst_31 = arith.constant dense<0.000000e+00> : vector<64x128xf32>
    %165 = tpu.matmul %161, %162, %cst_31 {dimension_numbers = #tpu.dot_dimension_numbers<[1], [0], [0], [1], [0, 0, 1, 1], [], []>} : vector<64x32xf32>, vector<32x128xf32>, vector<64x128xf32> -> vector<64x128xf32>
    %166 = vector.broadcast %164 : vector<1x128xf32> to vector<64x128xf32>
    %167 = arith.addf %165, %166 : vector<64x128xf32>
    %cst_32 = arith.constant 0.000000e+00 : f32
    %168 = vector.broadcast %cst_32 : f32 to vector<8x32xf32>
    %cst_33 = arith.constant 0.000000e+00 : f32
    %169 = vector.broadcast %cst_33 : f32 to vector<8x32xf32>
    %170 = vector.extract_strided_slice %167 {offsets = [0, 0], sizes = [8, 128], strides = [1, 1]} : vector<64x128xf32> to vector<8x128xf32>
    %cst_34 = arith.constant dense<0.000000e+00> : vector<8x128xf32>
    %171 = tpu.matmul %168, %163, %cst_34 {dimension_numbers = #tpu.dot_dimension_numbers<[1], [0], [0], [1], [0, 0, 1, 1], [], []>} : vector<8x32xf32>, vector<32x128xf32>, vector<8x128xf32> -> vector<8x128xf32>
    %172 = arith.addf %170, %171 : vector<8x128xf32>
    %173 = vector.extract_strided_slice %172 {offsets = [0, 0], sizes = [8, 96], strides = [1, 1]} : vector<8x128xf32> to vector<8x96xf32>
    %174 = arith.negf %173 : vector<8x96xf32>
    %175 = math.exp %174 : vector<8x96xf32>
    %cst_35 = arith.constant 1.000000e+00 : f32
    %176 = vector.broadcast %cst_35 : f32 to vector<8x96xf32>
    %177 = arith.addf %176, %175 : vector<8x96xf32>
    %178 = arith.divf %176, %177 : vector<8x96xf32>
    %179 = vector.extract_strided_slice %172 {offsets = [0, 96], sizes = [8, 32], strides = [1, 1]} : vector<8x128xf32> to vector<8x32xf32>
    %180 = math.tanh %179 : vector<8x32xf32>
    %181 = vector.extract_strided_slice %178 {offsets = [0, 0], sizes = [8, 32], strides = [1, 1]} : vector<8x96xf32> to vector<8x32xf32>
    %182 = vector.extract_strided_slice %178 {offsets = [0, 32], sizes = [8, 32], strides = [1, 1]} : vector<8x96xf32> to vector<8x32xf32>
    %183 = vector.extract_strided_slice %178 {offsets = [0, 64], sizes = [8, 32], strides = [1, 1]} : vector<8x96xf32> to vector<8x32xf32>
    %184 = arith.mulf %182, %169 : vector<8x32xf32>
    %185 = arith.mulf %181, %180 : vector<8x32xf32>
    %186 = arith.addf %184, %185 : vector<8x32xf32>
    %187 = math.tanh %186 : vector<8x32xf32>
    %188 = arith.mulf %183, %187 : vector<8x32xf32>
    %189 = vector.extract_strided_slice %167 {offsets = [8, 0], sizes = [8, 128], strides = [1, 1]} : vector<64x128xf32> to vector<8x128xf32>
    %cst_36 = arith.constant dense<0.000000e+00> : vector<8x128xf32>
    %190 = tpu.matmul %188, %163, %cst_36 {dimension_numbers = #tpu.dot_dimension_numbers<[1], [0], [0], [1], [0, 0, 1, 1], [], []>} : vector<8x32xf32>, vector<32x128xf32>, vector<8x128xf32> -> vector<8x128xf32>
    %191 = arith.addf %189, %190 : vector<8x128xf32>
    %192 = vector.extract_strided_slice %191 {offsets = [0, 0], sizes = [8, 96], strides = [1, 1]} : vector<8x128xf32> to vector<8x96xf32>
    %193 = arith.negf %192 : vector<8x96xf32>
    %194 = math.exp %193 : vector<8x96xf32>
    %cst_37 = arith.constant 1.000000e+00 : f32
    %195 = vector.broadcast %cst_37 : f32 to vector<8x96xf32>
    %196 = arith.addf %195, %194 : vector<8x96xf32>
    %197 = arith.divf %195, %196 : vector<8x96xf32>
    %198 = vector.extract_strided_slice %191 {offsets = [0, 96], sizes = [8, 32], strides = [1, 1]} : vector<8x128xf32> to vector<8x32xf32>
    %199 = math.tanh %198 : vector<8x32xf32>
    %200 = vector.extract_strided_slice %197 {offsets = [0, 0], sizes = [8, 32], strides = [1, 1]} : vector<8x96xf32> to vector<8x32xf32>
    %201 = vector.extract_strided_slice %197 {offsets = [0, 32], sizes = [8, 32], strides = [1, 1]} : vector<8x96xf32> to vector<8x32xf32>
    %202 = vector.extract_strided_slice %197 {offsets = [0, 64], sizes = [8, 32], strides = [1, 1]} : vector<8x96xf32> to vector<8x32xf32>
    %203 = arith.mulf %201, %186 : vector<8x32xf32>
    %204 = arith.mulf %200, %199 : vector<8x32xf32>
    %205 = arith.addf %203, %204 : vector<8x32xf32>
    %206 = math.tanh %205 : vector<8x32xf32>
    %207 = arith.mulf %202, %206 : vector<8x32xf32>
    %208 = vector.extract_strided_slice %167 {offsets = [16, 0], sizes = [8, 128], strides = [1, 1]} : vector<64x128xf32> to vector<8x128xf32>
    %cst_38 = arith.constant dense<0.000000e+00> : vector<8x128xf32>
    %209 = tpu.matmul %207, %163, %cst_38 {dimension_numbers = #tpu.dot_dimension_numbers<[1], [0], [0], [1], [0, 0, 1, 1], [], []>} : vector<8x32xf32>, vector<32x128xf32>, vector<8x128xf32> -> vector<8x128xf32>
    %210 = arith.addf %208, %209 : vector<8x128xf32>
    %211 = vector.extract_strided_slice %210 {offsets = [0, 0], sizes = [8, 96], strides = [1, 1]} : vector<8x128xf32> to vector<8x96xf32>
    %212 = arith.negf %211 : vector<8x96xf32>
    %213 = math.exp %212 : vector<8x96xf32>
    %cst_39 = arith.constant 1.000000e+00 : f32
    %214 = vector.broadcast %cst_39 : f32 to vector<8x96xf32>
    %215 = arith.addf %214, %213 : vector<8x96xf32>
    %216 = arith.divf %214, %215 : vector<8x96xf32>
    %217 = vector.extract_strided_slice %210 {offsets = [0, 96], sizes = [8, 32], strides = [1, 1]} : vector<8x128xf32> to vector<8x32xf32>
    %218 = math.tanh %217 : vector<8x32xf32>
    %219 = vector.extract_strided_slice %216 {offsets = [0, 0], sizes = [8, 32], strides = [1, 1]} : vector<8x96xf32> to vector<8x32xf32>
    %220 = vector.extract_strided_slice %216 {offsets = [0, 32], sizes = [8, 32], strides = [1, 1]} : vector<8x96xf32> to vector<8x32xf32>
    %221 = vector.extract_strided_slice %216 {offsets = [0, 64], sizes = [8, 32], strides = [1, 1]} : vector<8x96xf32> to vector<8x32xf32>
    %222 = arith.mulf %220, %205 : vector<8x32xf32>
    %223 = arith.mulf %219, %218 : vector<8x32xf32>
    %224 = arith.addf %222, %223 : vector<8x32xf32>
    %225 = math.tanh %224 : vector<8x32xf32>
    %226 = arith.mulf %221, %225 : vector<8x32xf32>
    %227 = vector.extract_strided_slice %167 {offsets = [24, 0], sizes = [8, 128], strides = [1, 1]} : vector<64x128xf32> to vector<8x128xf32>
    %cst_40 = arith.constant dense<0.000000e+00> : vector<8x128xf32>
    %228 = tpu.matmul %226, %163, %cst_40 {dimension_numbers = #tpu.dot_dimension_numbers<[1], [0], [0], [1], [0, 0, 1, 1], [], []>} : vector<8x32xf32>, vector<32x128xf32>, vector<8x128xf32> -> vector<8x128xf32>
    %229 = arith.addf %227, %228 : vector<8x128xf32>
    %230 = vector.extract_strided_slice %229 {offsets = [0, 0], sizes = [8, 96], strides = [1, 1]} : vector<8x128xf32> to vector<8x96xf32>
    %231 = arith.negf %230 : vector<8x96xf32>
    %232 = math.exp %231 : vector<8x96xf32>
    %cst_41 = arith.constant 1.000000e+00 : f32
    %233 = vector.broadcast %cst_41 : f32 to vector<8x96xf32>
    %234 = arith.addf %233, %232 : vector<8x96xf32>
    %235 = arith.divf %233, %234 : vector<8x96xf32>
    %236 = vector.extract_strided_slice %229 {offsets = [0, 96], sizes = [8, 32], strides = [1, 1]} : vector<8x128xf32> to vector<8x32xf32>
    %237 = math.tanh %236 : vector<8x32xf32>
    %238 = vector.extract_strided_slice %235 {offsets = [0, 0], sizes = [8, 32], strides = [1, 1]} : vector<8x96xf32> to vector<8x32xf32>
    %239 = vector.extract_strided_slice %235 {offsets = [0, 32], sizes = [8, 32], strides = [1, 1]} : vector<8x96xf32> to vector<8x32xf32>
    %240 = vector.extract_strided_slice %235 {offsets = [0, 64], sizes = [8, 32], strides = [1, 1]} : vector<8x96xf32> to vector<8x32xf32>
    %241 = arith.mulf %239, %224 : vector<8x32xf32>
    %242 = arith.mulf %238, %237 : vector<8x32xf32>
    %243 = arith.addf %241, %242 : vector<8x32xf32>
    %244 = math.tanh %243 : vector<8x32xf32>
    %245 = arith.mulf %240, %244 : vector<8x32xf32>
    %246 = vector.extract_strided_slice %167 {offsets = [32, 0], sizes = [8, 128], strides = [1, 1]} : vector<64x128xf32> to vector<8x128xf32>
    %cst_42 = arith.constant dense<0.000000e+00> : vector<8x128xf32>
    %247 = tpu.matmul %245, %163, %cst_42 {dimension_numbers = #tpu.dot_dimension_numbers<[1], [0], [0], [1], [0, 0, 1, 1], [], []>} : vector<8x32xf32>, vector<32x128xf32>, vector<8x128xf32> -> vector<8x128xf32>
    %248 = arith.addf %246, %247 : vector<8x128xf32>
    %249 = vector.extract_strided_slice %248 {offsets = [0, 0], sizes = [8, 96], strides = [1, 1]} : vector<8x128xf32> to vector<8x96xf32>
    %250 = arith.negf %249 : vector<8x96xf32>
    %251 = math.exp %250 : vector<8x96xf32>
    %cst_43 = arith.constant 1.000000e+00 : f32
    %252 = vector.broadcast %cst_43 : f32 to vector<8x96xf32>
    %253 = arith.addf %252, %251 : vector<8x96xf32>
    %254 = arith.divf %252, %253 : vector<8x96xf32>
    %255 = vector.extract_strided_slice %248 {offsets = [0, 96], sizes = [8, 32], strides = [1, 1]} : vector<8x128xf32> to vector<8x32xf32>
    %256 = math.tanh %255 : vector<8x32xf32>
    %257 = vector.extract_strided_slice %254 {offsets = [0, 0], sizes = [8, 32], strides = [1, 1]} : vector<8x96xf32> to vector<8x32xf32>
    %258 = vector.extract_strided_slice %254 {offsets = [0, 32], sizes = [8, 32], strides = [1, 1]} : vector<8x96xf32> to vector<8x32xf32>
    %259 = vector.extract_strided_slice %254 {offsets = [0, 64], sizes = [8, 32], strides = [1, 1]} : vector<8x96xf32> to vector<8x32xf32>
    %260 = arith.mulf %258, %243 : vector<8x32xf32>
    %261 = arith.mulf %257, %256 : vector<8x32xf32>
    %262 = arith.addf %260, %261 : vector<8x32xf32>
    %263 = math.tanh %262 : vector<8x32xf32>
    %264 = arith.mulf %259, %263 : vector<8x32xf32>
    %265 = vector.extract_strided_slice %167 {offsets = [40, 0], sizes = [8, 128], strides = [1, 1]} : vector<64x128xf32> to vector<8x128xf32>
    %cst_44 = arith.constant dense<0.000000e+00> : vector<8x128xf32>
    %266 = tpu.matmul %264, %163, %cst_44 {dimension_numbers = #tpu.dot_dimension_numbers<[1], [0], [0], [1], [0, 0, 1, 1], [], []>} : vector<8x32xf32>, vector<32x128xf32>, vector<8x128xf32> -> vector<8x128xf32>
    %267 = arith.addf %265, %266 : vector<8x128xf32>
    %268 = vector.extract_strided_slice %267 {offsets = [0, 0], sizes = [8, 96], strides = [1, 1]} : vector<8x128xf32> to vector<8x96xf32>
    %269 = arith.negf %268 : vector<8x96xf32>
    %270 = math.exp %269 : vector<8x96xf32>
    %cst_45 = arith.constant 1.000000e+00 : f32
    %271 = vector.broadcast %cst_45 : f32 to vector<8x96xf32>
    %272 = arith.addf %271, %270 : vector<8x96xf32>
    %273 = arith.divf %271, %272 : vector<8x96xf32>
    %274 = vector.extract_strided_slice %267 {offsets = [0, 96], sizes = [8, 32], strides = [1, 1]} : vector<8x128xf32> to vector<8x32xf32>
    %275 = math.tanh %274 : vector<8x32xf32>
    %276 = vector.extract_strided_slice %273 {offsets = [0, 0], sizes = [8, 32], strides = [1, 1]} : vector<8x96xf32> to vector<8x32xf32>
    %277 = vector.extract_strided_slice %273 {offsets = [0, 32], sizes = [8, 32], strides = [1, 1]} : vector<8x96xf32> to vector<8x32xf32>
    %278 = vector.extract_strided_slice %273 {offsets = [0, 64], sizes = [8, 32], strides = [1, 1]} : vector<8x96xf32> to vector<8x32xf32>
    %279 = arith.mulf %277, %262 : vector<8x32xf32>
    %280 = arith.mulf %276, %275 : vector<8x32xf32>
    %281 = arith.addf %279, %280 : vector<8x32xf32>
    %282 = math.tanh %281 : vector<8x32xf32>
    %283 = arith.mulf %278, %282 : vector<8x32xf32>
    %284 = vector.extract_strided_slice %167 {offsets = [48, 0], sizes = [8, 128], strides = [1, 1]} : vector<64x128xf32> to vector<8x128xf32>
    %cst_46 = arith.constant dense<0.000000e+00> : vector<8x128xf32>
    %285 = tpu.matmul %283, %163, %cst_46 {dimension_numbers = #tpu.dot_dimension_numbers<[1], [0], [0], [1], [0, 0, 1, 1], [], []>} : vector<8x32xf32>, vector<32x128xf32>, vector<8x128xf32> -> vector<8x128xf32>
    %286 = arith.addf %284, %285 : vector<8x128xf32>
    %287 = vector.extract_strided_slice %286 {offsets = [0, 0], sizes = [8, 96], strides = [1, 1]} : vector<8x128xf32> to vector<8x96xf32>
    %288 = arith.negf %287 : vector<8x96xf32>
    %289 = math.exp %288 : vector<8x96xf32>
    %cst_47 = arith.constant 1.000000e+00 : f32
    %290 = vector.broadcast %cst_47 : f32 to vector<8x96xf32>
    %291 = arith.addf %290, %289 : vector<8x96xf32>
    %292 = arith.divf %290, %291 : vector<8x96xf32>
    %293 = vector.extract_strided_slice %286 {offsets = [0, 96], sizes = [8, 32], strides = [1, 1]} : vector<8x128xf32> to vector<8x32xf32>
    %294 = math.tanh %293 : vector<8x32xf32>
    %295 = vector.extract_strided_slice %292 {offsets = [0, 0], sizes = [8, 32], strides = [1, 1]} : vector<8x96xf32> to vector<8x32xf32>
    %296 = vector.extract_strided_slice %292 {offsets = [0, 32], sizes = [8, 32], strides = [1, 1]} : vector<8x96xf32> to vector<8x32xf32>
    %297 = vector.extract_strided_slice %292 {offsets = [0, 64], sizes = [8, 32], strides = [1, 1]} : vector<8x96xf32> to vector<8x32xf32>
    %298 = arith.mulf %296, %281 : vector<8x32xf32>
    %299 = arith.mulf %295, %294 : vector<8x32xf32>
    %300 = arith.addf %298, %299 : vector<8x32xf32>
    %301 = math.tanh %300 : vector<8x32xf32>
    %302 = arith.mulf %297, %301 : vector<8x32xf32>
    %303 = vector.extract_strided_slice %167 {offsets = [56, 0], sizes = [8, 128], strides = [1, 1]} : vector<64x128xf32> to vector<8x128xf32>
    %cst_48 = arith.constant dense<0.000000e+00> : vector<8x128xf32>
    %304 = tpu.matmul %302, %163, %cst_48 {dimension_numbers = #tpu.dot_dimension_numbers<[1], [0], [0], [1], [0, 0, 1, 1], [], []>} : vector<8x32xf32>, vector<32x128xf32>, vector<8x128xf32> -> vector<8x128xf32>
    %305 = arith.addf %303, %304 : vector<8x128xf32>
    %306 = vector.extract_strided_slice %305 {offsets = [0, 0], sizes = [8, 96], strides = [1, 1]} : vector<8x128xf32> to vector<8x96xf32>
    %307 = arith.negf %306 : vector<8x96xf32>
    %308 = math.exp %307 : vector<8x96xf32>
    %cst_49 = arith.constant 1.000000e+00 : f32
    %309 = vector.broadcast %cst_49 : f32 to vector<8x96xf32>
    %310 = arith.addf %309, %308 : vector<8x96xf32>
    %311 = arith.divf %309, %310 : vector<8x96xf32>
    %312 = vector.extract_strided_slice %305 {offsets = [0, 96], sizes = [8, 32], strides = [1, 1]} : vector<8x128xf32> to vector<8x32xf32>
    %313 = math.tanh %312 : vector<8x32xf32>
    %314 = vector.extract_strided_slice %311 {offsets = [0, 0], sizes = [8, 32], strides = [1, 1]} : vector<8x96xf32> to vector<8x32xf32>
    %315 = vector.extract_strided_slice %311 {offsets = [0, 32], sizes = [8, 32], strides = [1, 1]} : vector<8x96xf32> to vector<8x32xf32>
    %316 = vector.extract_strided_slice %311 {offsets = [0, 64], sizes = [8, 32], strides = [1, 1]} : vector<8x96xf32> to vector<8x32xf32>
    %317 = arith.mulf %315, %300 : vector<8x32xf32>
    %318 = arith.mulf %314, %313 : vector<8x32xf32>
    %319 = arith.addf %317, %318 : vector<8x32xf32>
    %320 = math.tanh %319 : vector<8x32xf32>
    %321 = arith.mulf %316, %320 : vector<8x32xf32>
    %322 = tpu.concatenate %188, %207, %226, %245, %264, %283, %302, %321 in 0 : vector<8x32xf32>, vector<8x32xf32>, vector<8x32xf32>, vector<8x32xf32>, vector<8x32xf32>, vector<8x32xf32>, vector<8x32xf32>, vector<8x32xf32> -> vector<64x32xf32>
    %c0_50 = arith.constant 0 : index
    %c0_51 = arith.constant 0 : index
    %323 = vector.load %arg7[%c0_50, %c0_51] : memref<32x8xf32, #tpu.memory_space<vmem>>, vector<32x8xf32>
    %cst_52 = arith.constant dense<0.000000e+00> : vector<64x8xf32>
    %324 = tpu.matmul %322, %323, %cst_52 {dimension_numbers = #tpu.dot_dimension_numbers<[1], [0], [0], [1], [0, 0, 1, 1], [], []>} : vector<64x32xf32>, vector<32x8xf32>, vector<64x8xf32> -> vector<64x8xf32>
    %c0_53 = arith.constant 0 : index
    %c0_54 = arith.constant 0 : index
    %325 = vector.load %arg8[%c0_53, %c0_54] : memref<1x8xf32, #tpu.memory_space<vmem>>, vector<1x8xf32>
    %326 = vector.broadcast %325 : vector<1x8xf32> to vector<64x8xf32>
    %327 = arith.addf %324, %326 : vector<64x8xf32>
    %cst_55 = arith.constant dense<0xFF800000> : vector<64xf32>
    %328 = vector.multi_reduction <maximumf>, %327, %cst_55 [1] : vector<64x8xf32> to vector<64xf32>
    %329 = vector.shape_cast %328 : vector<64xf32> to vector<64x1xf32>
    %330 = vector.broadcast %329 : vector<64x1xf32> to vector<64x8xf32>
    %331 = arith.subf %327, %330 : vector<64x8xf32>
    %332 = math.exp %331 : vector<64x8xf32>
    %cst_56 = arith.constant dense<0.000000e+00> : vector<64xf32>
    %333 = vector.multi_reduction <add>, %332, %cst_56 [1] : vector<64x8xf32> to vector<64xf32>
    %334 = vector.shape_cast %333 : vector<64xf32> to vector<64x1xf32>
    %335 = vector.broadcast %334 : vector<64x1xf32> to vector<64x8xf32>
    %336 = arith.divf %332, %335 : vector<64x8xf32>
    %c0_57 = arith.constant 0 : index
    %c0_58 = arith.constant 0 : index
    %337 = vector.load %arg9[%c0_57, %c0_58] : memref<64x8xf32, #tpu.memory_space<vmem>>, vector<64x8xf32>
    tpu.vector_store %arg9[%c0_57, %c0_58], %336 {strides = array<i32>} : memref<64x8xf32, #tpu.memory_space<vmem>>, vector<64x8xf32>,
    return
  }
}

</mosaic_0001>

<llo_original>
// kernel: tpu_custom_call.1
$region0: #{tpu_custom_call.1}
  #allocation0 [shape = 'u32[]', space=smem, size = 0x4, offset = 0x4, fixed_abs, tag = 'smem constant byte address 0x4 - core index']
  #allocation1 [shape = 'u32[144,128]{1,0:T(1,128)}', space=vmem, size = 0x12000, scoped, tag = 'internal scratch']
  %s0 = inlined_call_operand.vmem [shape: f32[64,16], index: 0, kind: input, shape index: {}]
  %s1 = inlined_call_operand.vmem [shape: f32[16,128], index: 1, kind: input, shape index: {}]
  %s2 = inlined_call_operand.vmem [shape: f32[32,128], index: 2, kind: input, shape index: {}]
  %s3 = inlined_call_operand.vmem [shape: f32[1,128], index: 3, kind: input, shape index: {}]
  %s4 = inlined_call_operand.vmem [shape: f32[32,128], index: 4, kind: input, shape index: {}]
  %s5 = inlined_call_operand.vmem [shape: f32[32,128], index: 5, kind: input, shape index: {}]
  %s6 = inlined_call_operand.vmem [shape: f32[1,128], index: 6, kind: input, shape index: {}]
  %s7 = inlined_call_operand.vmem [shape: f32[32,8], index: 7, kind: input, shape index: {}]
  %s8 = inlined_call_operand.vmem [shape: f32[1,8], index: 8, kind: input, shape index: {}]
  %s9 = inlined_call_operand.vmem [shape: f32[64,8], index: 9, kind: output, shape index: {}]
  %s10 = sld [smem:[#allocation0]]
  $region46: #{tpu_custom_call.1} parent=0
    _
  %s12 = ssub.s32 1, %s10
  %s13 = scalar_select 0, %s12, %s10
  // Predicated region
  $region2: #{tpu_custom_call.1} parent=0 // pred_check
    _
  $region3: #{tpu_custom_call.1} parent=0 // pred_check_branch
    %15 = sbr.rel (0) target = $region5
  $region4: #{tpu_custom_call.1} parent=0 // pred_region
    _
  $region5: #{tpu_custom_call.1} parent=0 // pred_fallthru
    _
  // Predicated region
  $region6: #{tpu_custom_call.1} parent=0 // pred_check
    _
  $region7: #{tpu_custom_call.1} parent=0 // pred_check_branch
    %17 = sbr.rel (0) target = $region9
  $region8: #{tpu_custom_call.1} parent=0 // pred_region
    _
  $region9: #{tpu_custom_call.1} parent=0 // pred_fallthru
    _
  // Predicated region
  $region10: #{tpu_custom_call.1} parent=0 // pred_check
    _
  $region11: #{tpu_custom_call.1} parent=0 // pred_check_branch
    %19 = sbr.rel (0) target = $region13
  $region12: #{tpu_custom_call.1} parent=0 // pred_region
    _
  $region13: #{tpu_custom_call.1} parent=0 // pred_fallthru
    _
  // Predicated region
  $region14: #{tpu_custom_call.1} parent=0 // pred_check
    _
  $region15: #{tpu_custom_call.1} parent=0 // pred_check_branch
    %21 = sbr.rel (0) target = $region17
  $region16: #{tpu_custom_call.1} parent=0 // pred_region
    _
  $region17: #{tpu_custom_call.1} parent=0 // pred_fallthru
    _
  // Predicated region
  $region18: #{tpu_custom_call.1} parent=0 // pred_check
    _
  $region19: #{tpu_custom_call.1} parent=0 // pred_check_branch
    %23 = sbr.rel (0) target = $region21
  $region20: #{tpu_custom_call.1} parent=0 // pred_region
    _
  $region21: #{tpu_custom_call.1} parent=0 // pred_fallthru
    _
  // Predicated region
  $region22: #{tpu_custom_call.1} parent=0 // pred_check
    _
  $region23: #{tpu_custom_call.1} parent=0 // pred_check_branch
    %25 = sbr.rel (0) target = $region25
  $region24: #{tpu_custom_call.1} parent=0 // pred_region
    _
  $region25: #{tpu_custom_call.1} parent=0 // pred_fallthru
    _
  // Predicated region
  $region26: #{tpu_custom_call.1} parent=0 // pred_check
    _
  $region27: #{tpu_custom_call.1} parent=0 // pred_check_branch
    %27 = sbr.rel (0) target = $region29
  $region28: #{tpu_custom_call.1} parent=0 // pred_region
    _
  $region29: #{tpu_custom_call.1} parent=0 // pred_fallthru
    _
  // Predicated region
  $region30: #{tpu_custom_call.1} parent=0 // pred_check
    _
  $region31: #{tpu_custom_call.1} parent=0 // pred_check_branch
    %29 = sbr.rel (0) target = $region33
  $region32: #{tpu_custom_call.1} parent=0 // pred_region
    _
  $region33: #{tpu_custom_call.1} parent=0 // pred_fallthru
    _
  // Predicated region
  $region34: #{tpu_custom_call.1} parent=0 // pred_check
    _
  $region35: #{tpu_custom_call.1} parent=0 // pred_check_branch
    %31 = sbr.rel (0) target = $region37
  $region36: #{tpu_custom_call.1} parent=0 // pred_region
    _
  $region37: #{tpu_custom_call.1} parent=0 // pred_fallthru
    _
  %v32 = vld [vmem:[%s0] sm:$0xff]
  %v33 = vld [vmem:[%s0 + $0x8] sm:$0xff]
  %v34 = vld [vmem:[%s0 + $0x10] sm:$0xff]
  %v35 = vld [vmem:[%s0 + $0x18] sm:$0xff]
  %v36 = vld [vmem:[%s0 + $0x20] sm:$0xff]
  %v37 = vld [vmem:[%s0 + $0x28] sm:$0xff]
  %v38 = vld [vmem:[%s0 + $0x30] sm:$0xff]
  %v39 = vld [vmem:[%s0 + $0x38] sm:$0xff]
  %v40 = vld [vmem:[%s1] sm:$0xff]
  %v41 = vld [vmem:[%s1 + $0x8] sm:$0xff]
  %v42 = vld [vmem:[%s2] sm:$0xff]
  %v43 = vld [vmem:[%s2 + $0x8] sm:$0xff]
  %v44 = vld [vmem:[%s2 + $0x10] sm:$0xff]
  %v45 = vld [vmem:[%s2 + $0x18] sm:$0xff]
  %v46 = vld [vmem:[%s3] sm:$0x1]
  %v48 = vlaneseq
  %v49 = vshrl.u32 %v48, 7
  %v50 = vsub.s32 0, %v49
  %v51 = vrot.slane %v46, %v50
  %vm53 = vcmask 130048
  %v55 = vsel %vm53, %v32, 0
  %v58 = vsel %vm53, %v33, 0
  %v61 = vsel %vm53, %v34, 0
  %v64 = vsel %vm53, %v35, 0
  %v67 = vsel %vm53, %v36, 0
  %v70 = vsel %vm53, %v37, 0
  %v73 = vsel %vm53, %v38, 0
  %v76 = vsel %vm53, %v39, 0
  %78 = vmatprep.subr.mxu0 0.0
  %79 = vmatpush1.msra.mxu0 0.0
  %80 = vmatprep.subr.mxu0 0.0
  %81 = vmatpush1.msra.mxu0 0.0
  %82 = vmatprep.subr.mxu0 0.0
  %83 = vmatpush1.msra.mxu0 0.0
  %84 = vmatprep.subr.mxu0 0.0
  %85 = vmatpush1.msra.mxu0 0.0
  %86 = vmatprep.subr.mxu0 0.0
  %87 = vmatpush1.msra.mxu0 0.0
  %88 = vmatprep.subr.mxu0 0.0
  %89 = vmatpush1.msra.mxu0 0.0
  %90 = vmatprep.subr.mxu0 0.0
  %91 = vmatpush1.msra.mxu0 0.0
  %92 = vmatprep.subr.mxu0 0.0
  %93 = vmatpush1.msra.mxu0 0.0
  %94 = vmatprep.subr.mxu0 0.0
  %95 = vmatpush1.msra.mxu0 0.0
  %96 = vmatprep.subr.mxu0 0.0
  %97 = vmatpush1.msra.mxu0 0.0
  %98 = vmatprep.subr.mxu0 0.0
  %99 = vmatpush1.msra.mxu0 0.0
  %100 = vmatprep.subr.mxu0 0.0
  %101 = vmatpush1.msra.mxu0 0.0
  %102 = vmatprep.subr.mxu0 0.0
  %103 = vmatpush1.msra.mxu0 0.0
  %104 = vmatprep.subr.mxu0 0.0
  %105 = vmatpush1.msra.mxu0 0.0
  %106 = vmatprep.subr.mxu0 0.0
  %107 = vmatpush1.msra.mxu0 %v41
  %108 = vmatprep.subr.mxu0 0.0
  %109 = vmatpush1.msra.mxu0 %v40
  %110 = vmatprep.subr.mxu0 0.0
  %111 = vmatpush2.msra.mxu0 0.0
  %112 = vmatprep.subr.mxu0 0.0
  %113 = vmatpush2.msra.mxu0 0.0
  %114 = vmatprep.subr.mxu0 0.0
  %115 = vmatpush2.msra.mxu0 0.0
  %116 = vmatprep.subr.mxu0 0.0
  %117 = vmatpush2.msra.mxu0 0.0
  %118 = vmatprep.subr.mxu0 0.0
  %119 = vmatpush2.msra.mxu0 0.0
  %120 = vmatprep.subr.mxu0 0.0
  %121 = vmatpush2.msra.mxu0 0.0
  %122 = vmatprep.subr.mxu0 0.0
  %123 = vmatpush2.msra.mxu0 0.0
  %124 = vmatprep.subr.mxu0 0.0
  %125 = vmatpush2.msra.mxu0 0.0
  %126 = vmatprep.subr.mxu0 0.0
  %127 = vmatpush2.msra.mxu0 0.0
  %128 = vmatprep.subr.mxu0 0.0
  %129 = vmatpush2.msra.mxu0 0.0
  %130 = vmatprep.subr.mxu0 0.0
  %131 = vmatpush2.msra.mxu0 0.0
  %132 = vmatprep.subr.mxu0 0.0
  %133 = vmatpush2.msra.mxu0 0.0
  %134 = vmatprep.subr.mxu0 0.0
  %135 = vmatpush2.msra.mxu0 0.0
  %136 = vmatprep.subr.mxu0 0.0
  %137 = vmatpush2.msra.mxu0 0.0
  %138 = vmatprep.subr.mxu0 0.0
  %139 = vmatpush2.msra.mxu0 0.0
  %140 = vmatprep.subr.mxu0 0.0
  %141 = vmatpush2.msra.mxu0 0.0
  %142 = vmatprep.mubr.f32.mxu0 0.0
  %143 = vmatmul.mubr.f32.gmra.mxu0 %v55
  %v144 = vpop.f32.mrf.mxu0
  %v145 = vadd.f32 %v51, %v144
  %v146 = vpop.f32.mrf.mxu0
  %147 = vmatprep.mubr.f32.mxu0 0.0
  %148 = vmatmul.mubr.f32.gmra.mxu0 %v58
  %v149 = vpop.f32.mrf.mxu0
  %v150 = vadd.f32 %v51, %v149
  %v151 = vpop.f32.mrf.mxu0
  %152 = vmatprep.mubr.f32.mxu0 0.0
  %153 = vmatmul.mubr.f32.gmra.mxu0 %v61
  %v154 = vpop.f32.mrf.mxu0
  %v155 = vadd.f32 %v51, %v154
  %v156 = vpop.f32.mrf.mxu0
  %157 = vmatprep.mubr.f32.mxu0 0.0
  %158 = vmatmul.mubr.f32.gmra.mxu0 %v64
  %v159 = vpop.f32.mrf.mxu0
  %v160 = vadd.f32 %v51, %v159
  %v161 = vpop.f32.mrf.mxu0
  %162 = vmatprep.mubr.f32.mxu0 0.0
  %163 = vmatmul.mubr.f32.gmra.mxu0 %v67
  %v164 = vpop.f32.mrf.mxu0
  %v165 = vadd.f32 %v51, %v164
  %v166 = vpop.f32.mrf.mxu0
  %167 = vmatprep.mubr.f32.mxu0 0.0
  %168 = vmatmul.mubr.f32.gmra.mxu0 %v70
  %v169 = vpop.f32.mrf.mxu0
  %v170 = vadd.f32 %v51, %v169
  %v171 = vpop.f32.mrf.mxu0
  %172 = vmatprep.mubr.f32.mxu0 0.0
  %173 = vmatmul.mubr.f32.gmra.mxu0 %v73
  %v174 = vpop.f32.mrf.mxu0
  %v175 = vadd.f32 %v51, %v174
  %v176 = vpop.f32.mrf.mxu0
  %177 = vmatprep.mubr.f32.mxu0 0.0
  %178 = vmatmul.mubr.f32.gmra.mxu0 %v76
  %v179 = vpop.f32.mrf.mxu0
  %v180 = vadd.f32 %v51, %v179
  %v181 = vpop.f32.mrf.mxu0
  %182 = vdwg.mxu0
  %vm183 = vcmask 261120
  %v185 = vsel %vm183, 0.0, 0
  %187 = vmatprep.subr.mxu0 0.0
  %188 = vmatpush1.msra.mxu0 0.0
  %189 = vmatprep.subr.mxu0 0.0
  %190 = vmatpush1.msra.mxu0 0.0
  %191 = vmatprep.subr.mxu0 0.0
  %192 = vmatpush1.msra.mxu0 0.0
  %193 = vmatprep.subr.mxu0 0.0
  %194 = vmatpush1.msra.mxu0 0.0
  %195 = vmatprep.subr.mxu0 0.0
  %196 = vmatpush1.msra.mxu0 0.0
  %197 = vmatprep.subr.mxu0 0.0
  %198 = vmatpush1.msra.mxu0 0.0
  %199 = vmatprep.subr.mxu0 0.0
  %200 = vmatpush1.msra.mxu0 0.0
  %201 = vmatprep.subr.mxu0 0.0
  %202 = vmatpush1.msra.mxu0 0.0
  %203 = vmatprep.subr.mxu0 0.0
  %204 = vmatpush1.msra.mxu0 0.0
  %205 = vmatprep.subr.mxu0 0.0
  %206 = vmatpush1.msra.mxu0 0.0
  %207 = vmatprep.subr.mxu0 0.0
  %208 = vmatpush1.msra.mxu0 0.0
  %209 = vmatprep.subr.mxu0 0.0
  %210 = vmatpush1.msra.mxu0 0.0
  %211 = vmatprep.subr.mxu0 0.0
  %212 = vmatpush1.msra.mxu0 %v45
  %213 = vmatprep.subr.mxu0 0.0
  %214 = vmatpush1.msra.mxu0 %v44
  %215 = vmatprep.subr.mxu0 0.0
  %216 = vmatpush1.msra.mxu0 %v43
  %217 = vmatprep.subr.mxu0 0.0
  %218 = vmatpush1.msra.mxu0 %v42
  %219 = vmatprep.subr.mxu0 0.0
  %220 = vmatpush2.msra.mxu0 0.0
  %221 = vmatprep.subr.mxu0 0.0
  %222 = vmatpush2.msra.mxu0 0.0
  %223 = vmatprep.subr.mxu0 0.0
  %224 = vmatpush2.msra.mxu0 0.0
  %225 = vmatprep.subr.mxu0 0.0
  %226 = vmatpush2.msra.mxu0 0.0
  %227 = vmatprep.subr.mxu0 0.0
  %228 = vmatpush2.msra.mxu0 0.0
  %229 = vmatprep.subr.mxu0 0.0
  %230 = vmatpush2.msra.mxu0 0.0
  %231 = vmatprep.subr.mxu0 0.0
  %232 = vmatpush2.msra.mxu0 0.0
  %233 = vmatprep.subr.mxu0 0.0
  %234 = vmatpush2.msra.mxu0 0.0
  %235 = vmatprep.subr.mxu0 0.0
  %236 = vmatpush2.msra.mxu0 0.0
  %237 = vmatprep.subr.mxu0 0.0
  %238 = vmatpush2.msra.mxu0 0.0
  %239 = vmatprep.subr.mxu0 0.0
  %240 = vmatpush2.msra.mxu0 0.0
  %241 = vmatprep.subr.mxu0 0.0
  %242 = vmatpush2.msra.mxu0 0.0
  %243 = vmatprep.subr.mxu0 0.0
  %244 = vmatpush2.msra.mxu0 0.0
  %245 = vmatprep.subr.mxu0 0.0
  %246 = vmatpush2.msra.mxu0 0.0
  %247 = vmatprep.subr.mxu0 0.0
  %248 = vmatpush2.msra.mxu0 0.0
  %249 = vmatprep.subr.mxu0 0.0
  %250 = vmatpush2.msra.mxu0 0.0
  %251 = vmatprep.mubr.f32.mxu0 0.0
  %252 = vmatmul.mubr.f32.gmra.mxu0 %v185
  %v253 = vpop.f32.mrf.mxu0
  %v254 = vadd.f32 0.0, %v253
  %v255 = vpop.f32.mrf.mxu0
  %256 = vdwg.mxu0
  %v257 = vadd.f32 %v145, %v254
  %v258 = vxor.u32 %v257, 2147483648
  %v259 = vmul.f32 %v258, 1.442695
  %v260 = vpow.pop %v259
  %v261 = vadd.f32 %v260, 1.0
  %v262 = vrcp.pop %v261
  %v263 = vmul.f32 1.0, %v262
  %v264 = vtanh.pop %v257
  %v265 = vmul.f32 %v263, 0.0
  %267 = vrot.lane.b32.xlu0 %v264, 32
  %v268 = vpop.permute.xlu0 %267
  %v270 = vmul.f32 %v263, %v268
  %272 = vrot.lane.b32.xlu0 %v270, 32
  %v273 = vpop.permute.xlu0 %272
  %v275 = vadd.f32 %v265, %v273
  %v276 = vtanh.pop %v275
  %278 = vrot.lane.b32.xlu0 %v276, 32
  %v279 = vpop.permute.xlu0 %278
  %v281 = vmul.f32 %v263, %v279
  %283 = vrot.lane.b32.xlu0 %v281, 64
  %v284 = vpop.permute.xlu0 %283
  %v285 = vsel %vm183, %v284, 0
  %287 = vmatprep.subr.mxu0 0.0
  %288 = vmatpush1.msra.mxu0 0.0
  %289 = vmatprep.subr.mxu0 0.0
  %290 = vmatpush1.msra.mxu0 0.0
  %291 = vmatprep.subr.mxu0 0.0
  %292 = vmatpush1.msra.mxu0 0.0
  %293 = vmatprep.subr.mxu0 0.0
  %294 = vmatpush1.msra.mxu0 0.0
  %295 = vmatprep.subr.mxu0 0.0
  %296 = vmatpush1.msra.mxu0 0.0
  %297 = vmatprep.subr.mxu0 0.0
  %298 = vmatpush1.msra.mxu0 0.0
  %299 = vmatprep.subr.mxu0 0.0
  %300 = vmatpush1.msra.mxu0 0.0
  %301 = vmatprep.subr.mxu0 0.0
  %302 = vmatpush1.msra.mxu0 0.0
  %303 = vmatprep.subr.mxu0 0.0
  %304 = vmatpush1.msra.mxu0 0.0
  %305 = vmatprep.subr.mxu0 0.0
  %306 = vmatpush1.msra.mxu0 0.0
  %307 = vmatprep.subr.mxu0 0.0
  %308 = vmatpush1.msra.mxu0 0.0
  %309 = vmatprep.subr.mxu0 0.0
  %310 = vmatpush1.msra.mxu0 0.0
  %311 = vmatprep.subr.mxu0 0.0
  %312 = vmatpush1.msra.mxu0 %v45
  %313 = vmatprep.subr.mxu0 0.0
  %314 = vmatpush1.msra.mxu0 %v44
  %315 = vmatprep.subr.mxu0 0.0
  %316 = vmatpush1.msra.mxu0 %v43
  %317 = vmatprep.subr.mxu0 0.0
  %318 = vmatpush1.msra.mxu0 %v42
  %319 = vmatprep.subr.mxu0 0.0
  %320 = vmatpush2.msra.mxu0 0.0
  %321 = vmatprep.subr.mxu0 0.0
  %322 = vmatpush2.msra.mxu0 0.0
  %323 = vmatprep.subr.mxu0 0.0
  %324 = vmatpush2.msra.mxu0 0.0
  %325 = vmatprep.subr.mxu0 0.0
  %326 = vmatpush2.msra.mxu0 0.0
  %327 = vmatprep.subr.mxu0 0.0
  %328 = vmatpush2.msra.mxu0 0.0
  %329 = vmatprep.subr.mxu0 0.0
  %330 = vmatpush2.msra.mxu0 0.0
  %331 = vmatprep.subr.mxu0 0.0
  %332 = vmatpush2.msra.mxu0 0.0
  %333 = vmatprep.subr.mxu0 0.0
  %334 = vmatpush2.msra.mxu0 0.0
  %335 = vmatprep.subr.mxu0 0.0
  %336 = vmatpush2.msra.mxu0 0.0
  %337 = vmatprep.subr.mxu0 0.0
  %338 = vmatpush2.msra.mxu0 0.0
  %339 = vmatprep.subr.mxu0 0.0
  %340 = vmatpush2.msra.mxu0 0.0
  %341 = vmatprep.subr.mxu0 0.0
  %342 = vmatpush2.msra.mxu0 0.0
  %343 = vmatprep.subr.mxu0 0.0
  %344 = vmatpush2.msra.mxu0 0.0
  %345 = vmatprep.subr.mxu0 0.0
  %346 = vmatpush2.msra.mxu0 0.0
  %347 = vmatprep.subr.mxu0 0.0
  %348 = vmatpush2.msra.mxu0 0.0
  %349 = vmatprep.subr.mxu0 0.0
  %350 = vmatpush2.msra.mxu0 0.0
  %351 = vmatprep.mubr.f32.mxu0 0.0
  %352 = vmatmul.mubr.f32.gmra.mxu0 %v285
  %v353 = vpop.f32.mrf.mxu0
  %v354 = vadd.f32 0.0, %v353
  %v355 = vpop.f32.mrf.mxu0
  %356 = vdwg.mxu0
  %v357 = vadd.f32 %v150, %v354
  %v358 = vxor.u32 %v357, 2147483648
  %v359 = vmul.f32 %v358, 1.442695
  %v360 = vpow.pop %v359
  %v361 = vadd.f32 %v360, 1.0
  %v362 = vrcp.pop %v361
  %v363 = vmul.f32 1.0, %v362
  %v364 = vtanh.pop %v357
  %v365 = vmul.f32 %v363, %v275
  %367 = vrot.lane.b32.xlu0 %v364, 32
  %v368 = vpop.permute.xlu0 %367
  %v370 = vmul.f32 %v363, %v368
  %372 = vrot.lane.b32.xlu0 %v370, 32
  %v373 = vpop.permute.xlu0 %372
  %v375 = vadd.f32 %v365, %v373
  %v376 = vtanh.pop %v375
  %378 = vrot.lane.b32.xlu0 %v376, 32
  %v379 = vpop.permute.xlu0 %378
  %v381 = vmul.f32 %v363, %v379
  %383 = vrot.lane.b32.xlu0 %v381, 64
  %v384 = vpop.permute.xlu0 %383
  %v385 = vsel %vm183, %v384, 0
  %387 = vmatprep.subr.mxu0 0.0
  %388 = vmatpush1.msra.mxu0 0.0
  %389 = vmatprep.subr.mxu0 0.0
  %390 = vmatpush1.msra.mxu0 0.0
  %391 = vmatprep.subr.mxu0 0.0
  %392 = vmatpush1.msra.mxu0 0.0
  %393 = vmatprep.subr.mxu0 0.0
  %394 = vmatpush1.msra.mxu0 0.0
  %395 = vmatprep.subr.mxu0 0.0
  %396 = vmatpush1.msra.mxu0 0.0
  %397 = vmatprep.subr.mxu0 0.0
  %398 = vmatpush1.msra.mxu0 0.0
  %399 = vmatprep.subr.mxu0 0.0
  %400 = vmatpush1.msra.mxu0 0.0
  %401 = vmatprep.subr.mxu0 0.0
  %402 = vmatpush1.msra.mxu0 0.0
  %403 = vmatprep.subr.mxu0 0.0
  %404 = vmatpush1.msra.mxu0 0.0
  %405 = vmatprep.subr.mxu0 0.0
  %406 = vmatpush1.msra.mxu0 0.0
  %407 = vmatprep.subr.mxu0 0.0
  %408 = vmatpush1.msra.mxu0 0.0
  %409 = vmatprep.subr.mxu0 0.0
  %410 = vmatpush1.msra.mxu0 0.0
  %411 = vmatprep.subr.mxu0 0.0
  %412 = vmatpush1.msra.mxu0 %v45
  %413 = vmatprep.subr.mxu0 0.0
  %414 = vmatpush1.msra.mxu0 %v44
  %415 = vmatprep.subr.mxu0 0.0
  %416 = vmatpush1.msra.mxu0 %v43
  %417 = vmatprep.subr.mxu0 0.0
  %418 = vmatpush1.msra.mxu0 %v42
  %419 = vmatprep.subr.mxu0 0.0
  %420 = vmatpush2.msra.mxu0 0.0
  %421 = vmatprep.subr.mxu0 0.0
  %422 = vmatpush2.msra.mxu0 0.0
  %423 = vmatprep.subr.mxu0 0.0
  %424 = vmatpush2.msra.mxu0 0.0
  %425 = vmatprep.subr.mxu0 0.0
  %426 = vmatpush2.msra.mxu0 0.0
  %427 = vmatprep.subr.mxu0 0.0
  %428 = vmatpush2.msra.mxu0 0.0
  %429 = vmatprep.subr.mxu0 0.0
  %430 = vmatpush2.msra.mxu0 0.0
  %431 = vmatprep.subr.mxu0 0.0
  %432 = vmatpush2.msra.mxu0 0.0
  %433 = vmatprep.subr.mxu0 0.0
  %434 = vmatpush2.msra.mxu0 0.0
  %435 = vmatprep.subr.mxu0 0.0
  %436 = vmatpush2.msra.mxu0 0.0
  %437 = vmatprep.subr.mxu0 0.0
  %438 = vmatpush2.msra.mxu0 0.0
  %439 = vmatprep.subr.mxu0 0.0
  %440 = vmatpush2.msra.mxu0 0.0
  %441 = vmatprep.subr.mxu0 0.0
  %442 = vmatpush2.msra.mxu0 0.0
  %443 = vmatprep.subr.mxu0 0.0
  %444 = vmatpush2.msra.mxu0 0.0
  %445 = vmatprep.subr.mxu0 0.0
  %446 = vmatpush2.msra.mxu0 0.0
  %447 = vmatprep.subr.mxu0 0.0
  %448 = vmatpush2.msra.mxu0 0.0
  %449 = vmatprep.subr.mxu0 0.0
  %450 = vmatpush2.msra.mxu0 0.0
  %451 = vmatprep.mubr.f32.mxu0 0.0
  %452 = vmatmul.mubr.f32.gmra.mxu0 %v385
  %v453 = vpop.f32.mrf.mxu0
  %v454 = vadd.f32 0.0, %v453
  %v455 = vpop.f32.mrf.mxu0
  %456 = vdwg.mxu0
  %v457 = vadd.f32 %v155, %v454
  %v458 = vxor.u32 %v457, 2147483648
  %v459 = vmul.f32 %v458, 1.442695
  %v460 = vpow.pop %v459
  %v461 = vadd.f32 %v460, 1.0
  %v462 = vrcp.pop %v461
  %v463 = vmul.f32 1.0, %v462
  %v464 = vtanh.pop %v457
  %v465 = vmul.f32 %v463, %v375
  %467 = vrot.lane.b32.xlu0 %v464, 32
  %v468 = vpop.permute.xlu0 %467
  %v470 = vmul.f32 %v463, %v468
  %472 = vrot.lane.b32.xlu0 %v470, 32
  %v473 = vpop.permute.xlu0 %472
  %v475 = vadd.f32 %v465, %v473
  %v476 = vtanh.pop %v475
  %478 = vrot.lane.b32.xlu0 %v476, 32
  %v479 = vpop.permute.xlu0 %478
  %v481 = vmul.f32 %v463, %v479
  %483 = vrot.lane.b32.xlu0 %v481, 64
  %v484 = vpop.permute.xlu0 %483
  %v485 = vsel %vm183, %v484, 0
  %487 = vmatprep.subr.mxu0 0.0
  %488 = vmatpush1.msra.mxu0 0.0
  %489 = vmatprep.subr.mxu0 0.0
  %490 = vmatpush1.msra.mxu0 0.0
  %491 = vmatprep.subr.mxu0 0.0
  %492 = vmatpush1.msra.mxu0 0.0
  %493 = vmatprep.subr.mxu0 0.0
  %494 = vmatpush1.msra.mxu0 0.0
  %495 = vmatprep.subr.mxu0 0.0
  %496 = vmatpush1.msra.mxu0 0.0
  %497 = vmatprep.subr.mxu0 0.0
  %498 = vmatpush1.msra.mxu0 0.0
  %499 = vmatprep.subr.mxu0 0.0
  %500 = vmatpush1.msra.mxu0 0.0
  %501 = vmatprep.subr.mxu0 0.0
  %502 = vmatpush1.msra.mxu0 0.0
  %503 = vmatprep.subr.mxu0 0.0
  %504 = vmatpush1.msra.mxu0 0.0
  %505 = vmatprep.subr.mxu0 0.0
  %506 = vmatpush1.msra.mxu0 0.0
  %507 = vmatprep.subr.mxu0 0.0
  %508 = vmatpush1.msra.mxu0 0.0
  %509 = vmatprep.subr.mxu0 0.0
  %510 = vmatpush1.msra.mxu0 0.0
  %511 = vmatprep.subr.mxu0 0.0
  %512 = vmatpush1.msra.mxu0 %v45
  %513 = vmatprep.subr.mxu0 0.0
  %514 = vmatpush1.msra.mxu0 %v44
  %515 = vmatprep.subr.mxu0 0.0
  %516 = vmatpush1.msra.mxu0 %v43
  %517 = vmatprep.subr.mxu0 0.0
  %518 = vmatpush1.msra.mxu0 %v42
  %519 = vmatprep.subr.mxu0 0.0
  %520 = vmatpush2.msra.mxu0 0.0
  %521 = vmatprep.subr.mxu0 0.0
  %522 = vmatpush2.msra.mxu0 0.0
  %523 = vmatprep.subr.mxu0 0.0
  %524 = vmatpush2.msra.mxu0 0.0
  %525 = vmatprep.subr.mxu0 0.0
  %526 = vmatpush2.msra.mxu0 0.0
  %527 = vmatprep.subr.mxu0 0.0
  %528 = vmatpush2.msra.mxu0 0.0
  %529 = vmatprep.subr.mxu0 0.0
  %530 = vmatpush2.msra.mxu0 0.0
  %531 = vmatprep.subr.mxu0 0.0
  %532 = vmatpush2.msra.mxu0 0.0
  %533 = vmatprep.subr.mxu0 0.0
  %534 = vmatpush2.msra.mxu0 0.0
  %535 = vmatprep.subr.mxu0 0.0
  %536 = vmatpush2.msra.mxu0 0.0
  %537 = vmatprep.subr.mxu0 0.0
  %538 = vmatpush2.msra.mxu0 0.0
  %539 = vmatprep.subr.mxu0 0.0
  %540 = vmatpush2.msra.mxu0 0.0
  %541 = vmatprep.subr.mxu0 0.0
  %542 = vmatpush2.msra.mxu0 0.0
  %543 = vmatprep.subr.mxu0 0.0
  %544 = vmatpush2.msra.mxu0 0.0
  %545 = vmatprep.subr.mxu0 0.0
  %546 = vmatpush2.msra.mxu0 0.0
  %547 = vmatprep.subr.mxu0 0.0
  %548 = vmatpush2.msra.mxu0 0.0
  %549 = vmatprep.subr.mxu0 0.0
  %550 = vmatpush2.msra.mxu0 0.0
  %551 = vmatprep.mubr.f32.mxu0 0.0
  %552 = vmatmul.mubr.f32.gmra.mxu0 %v485
  %v553 = vpop.f32.mrf.mxu0
  %v554 = vadd.f32 0.0, %v553
  %v555 = vpop.f32.mrf.mxu0
  %556 = vdwg.mxu0
  %v557 = vadd.f32 %v160, %v554
  %v558 = vxor.u32 %v557, 2147483648
  %v559 = vmul.f32 %v558, 1.442695
  %v560 = vpow.pop %v559
  %v561 = vadd.f32 %v560, 1.0
  %v562 = vrcp.pop %v561
  %v563 = vmul.f32 1.0, %v562
  %v564 = vtanh.pop %v557
  %v565 = vmul.f32 %v563, %v475
  %567 = vrot.lane.b32.xlu0 %v564, 32
  %v568 = vpop.permute.xlu0 %567
  %v570 = vmul.f32 %v563, %v568
  %572 = vrot.lane.b32.xlu0 %v570, 32
  %v573 = vpop.permute.xlu0 %572
  %v575 = vadd.f32 %v565, %v573
  %v576 = vtanh.pop %v575
  %578 = vrot.lane.b32.xlu0 %v576, 32
  %v579 = vpop.permute.xlu0 %578
  %v581 = vmul.f32 %v563, %v579
  %583 = vrot.lane.b32.xlu0 %v581, 64
  %v584 = vpop.permute.xlu0 %583
  %v585 = vsel %vm183, %v584, 0
  %587 = vmatprep.subr.mxu0 0.0
  %588 = vmatpush1.msra.mxu0 0.0
  %589 = vmatprep.subr.mxu0 0.0
  %590 = vmatpush1.msra.mxu0 0.0
  %591 = vmatprep.subr.mxu0 0.0
  %592 = vmatpush1.msra.mxu0 0.0
  %593 = vmatprep.subr.mxu0 0.0
  %594 = vmatpush1.msra.mxu0 0.0
  %595 = vmatprep.subr.mxu0 0.0
  %596 = vmatpush1.msra.mxu0 0.0
  %597 = vmatprep.subr.mxu0 0.0
  %598 = vmatpush1.msra.mxu0 0.0
  %599 = vmatprep.subr.mxu0 0.0
  %600 = vmatpush1.msra.mxu0 0.0
  %601 = vmatprep.subr.mxu0 0.0
  %602 = vmatpush1.msra.mxu0 0.0
  %603 = vmatprep.subr.mxu0 0.0
  %604 = vmatpush1.msra.mxu0 0.0
  %605 = vmatprep.subr.mxu0 0.0
  %606 = vmatpush1.msra.mxu0 0.0
  %607 = vmatprep.subr.mxu0 0.0
  %608 = vmatpush1.msra.mxu0 0.0
  %609 = vmatprep.subr.mxu0 0.0
  %610 = vmatpush1.msra.mxu0 0.0
  %611 = vmatprep.subr.mxu0 0.0
  %612 = vmatpush1.msra.mxu0 %v45
  %613 = vmatprep.subr.mxu0 0.0
  %614 = vmatpush1.msra.mxu0 %v44
  %615 = vmatprep.subr.mxu0 0.0
  %616 = vmatpush1.msra.mxu0 %v43
  %617 = vmatprep.subr.mxu0 0.0
  %618 = vmatpush1.msra.mxu0 %v42
  %619 = vmatprep.subr.mxu0 0.0
  %620 = vmatpush2.msra.mxu0 0.0
  %621 = vmatprep.subr.mxu0 0.0
  %622 = vmatpush2.msra.mxu0 0.0
  %623 = vmatprep.subr.mxu0 0.0
  %624 = vmatpush2.msra.mxu0 0.0
  %625 = vmatprep.subr.mxu0 0.0
  %626 = vmatpush2.msra.mxu0 0.0
  %627 = vmatprep.subr.mxu0 0.0
  %628 = vmatpush2.msra.mxu0 0.0
  %629 = vmatprep.subr.mxu0 0.0
  %630 = vmatpush2.msra.mxu0 0.0
  %631 = vmatprep.subr.mxu0 0.0
  %632 = vmatpush2.msra.mxu0 0.0
  %633 = vmatprep.subr.mxu0 0.0
  %634 = vmatpush2.msra.mxu0 0.0
  %635 = vmatprep.subr.mxu0 0.0
  %636 = vmatpush2.msra.mxu0 0.0
  %637 = vmatprep.subr.mxu0 0.0
  %638 = vmatpush2.msra.mxu0 0.0
  %639 = vmatprep.subr.mxu0 0.0
  %640 = vmatpush2.msra.mxu0 0.0
  %641 = vmatprep.subr.mxu0 0.0
  %642 = vmatpush2.msra.mxu0 0.0
  %643 = vmatprep.subr.mxu0 0.0
  %644 = vmatpush2.msra.mxu0 0.0
  %645 = vmatprep.subr.mxu0 0.0
  %646 = vmatpush2.msra.mxu0 0.0
  %647 = vmatprep.subr.mxu0 0.0
  %648 = vmatpush2.msra.mxu0 0.0
  %649 = vmatprep.subr.mxu0 0.0
  %650 = vmatpush2.msra.mxu0 0.0
  %651 = vmatprep.mubr.f32.mxu0 0.0
  %652 = vmatmul.mubr.f32.gmra.mxu0 %v585
  %v653 = vpop.f32.mrf.mxu0
  %v654 = vadd.f32 0.0, %v653
  %v655 = vpop.f32.mrf.mxu0
  %656 = vdwg.mxu0
  %v657 = vadd.f32 %v165, %v654
  %v658 = vxor.u32 %v657, 2147483648
  %v659 = vmul.f32 %v658, 1.442695
  %v660 = vpow.pop %v659
  %v661 = vadd.f32 %v660, 1.0
  %v662 = vrcp.pop %v661
  %v663 = vmul.f32 1.0, %v662
  %v664 = vtanh.pop %v657
  %v665 = vmul.f32 %v663, %v575
  %667 = vrot.lane.b32.xlu0 %v664, 32
  %v668 = vpop.permute.xlu0 %667
  %v670 = vmul.f32 %v663, %v668
  %672 = vrot.lane.b32.xlu0 %v670, 32
  %v673 = vpop.permute.xlu0 %672
  %v675 = vadd.f32 %v665, %v673
  %v676 = vtanh.pop %v675
  %678 = vrot.lane.b32.xlu0 %v676, 32
  %v679 = vpop.permute.xlu0 %678
  %v681 = vmul.f32 %v663, %v679
  %683 = vrot.lane.b32.xlu0 %v681, 64
  %v684 = vpop.permute.xlu0 %683
  %v685 = vsel %vm183, %v684, 0
  %687 = vmatprep.subr.mxu0 0.0
  %688 = vmatpush1.msra.mxu0 0.0
  %689 = vmatprep.subr.mxu0 0.0
  %690 = vmatpush1.msra.mxu0 0.0
  %691 = vmatprep.subr.mxu0 0.0
  %692 = vmatpush1.msra.mxu0 0.0
  %693 = vmatprep.subr.mxu0 0.0
  %694 = vmatpush1.msra.mxu0 0.0
  %695 = vmatprep.subr.mxu0 0.0
  %696 = vmatpush1.msra.mxu0 0.0
  %697 = vmatprep.subr.mxu0 0.0
  %698 = vmatpush1.msra.mxu0 0.0
  %699 = vmatprep.subr.mxu0 0.0
  %700 = vmatpush1.msra.mxu0 0.0
  %701 = vmatprep.subr.mxu0 0.0
  %702 = vmatpush1.msra.mxu0 0.0
  %703 = vmatprep.subr.mxu0 0.0
  %704 = vmatpush1.msra.mxu0 0.0
  %705 = vmatprep.subr.mxu0 0.0
  %706 = vmatpush1.msra.mxu0 0.0
  %707 = vmatprep.subr.mxu0 0.0
  %708 = vmatpush1.msra.mxu0 0.0
  %709 = vmatprep.subr.mxu0 0.0
  %710 = vmatpush1.msra.mxu0 0.0
  %711 = vmatprep.subr.mxu0 0.0
  %712 = vmatpush1.msra.mxu0 %v45
  %713 = vmatprep.subr.mxu0 0.0
  %714 = vmatpush1.msra.mxu0 %v44
  %715 = vmatprep.subr.mxu0 0.0
  %716 = vmatpush1.msra.mxu0 %v43
  %717 = vmatprep.subr.mxu0 0.0
  %718 = vmatpush1.msra.mxu0 %v42
  %719 = vmatprep.subr.mxu0 0.0
  %720 = vmatpush2.msra.mxu0 0.0
  %721 = vmatprep.subr.mxu0 0.0
  %722 = vmatpush2.msra.mxu0 0.0
  %723 = vmatprep.subr.mxu0 0.0
  %724 = vmatpush2.msra.mxu0 0.0
  %725 = vmatprep.subr.mxu0 0.0
  %726 = vmatpush2.msra.mxu0 0.0
  %727 = vmatprep.subr.mxu0 0.0
  %728 = vmatpush2.msra.mxu0 0.0
  %729 = vmatprep.subr.mxu0 0.0
  %730 = vmatpush2.msra.mxu0 0.0
  %731 = vmatprep.subr.mxu0 0.0
  %732 = vmatpush2.msra.mxu0 0.0
  %733 = vmatprep.subr.mxu0 0.0
  %734 = vmatpush2.msra.mxu0 0.0
  %735 = vmatprep.subr.mxu0 0.0
  %736 = vmatpush2.msra.mxu0 0.0
  %737 = vmatprep.subr.mxu0 0.0
  %738 = vmatpush2.msra.mxu0 0.0
  %739 = vmatprep.subr.mxu0 0.0
  %740 = vmatpush2.msra.mxu0 0.0
  %741 = vmatprep.subr.mxu0 0.0
  %742 = vmatpush2.msra.mxu0 0.0
  %743 = vmatprep.subr.mxu0 0.0
  %744 = vmatpush2.msra.mxu0 0.0
  %745 = vmatprep.subr.mxu0 0.0
  %746 = vmatpush2.msra.mxu0 0.0
  %747 = vmatprep.subr.mxu0 0.0
  %748 = vmatpush2.msra.mxu0 0.0
  %749 = vmatprep.subr.mxu0 0.0
  %750 = vmatpush2.msra.mxu0 0.0
  %751 = vmatprep.mubr.f32.mxu0 0.0
  %752 = vmatmul.mubr.f32.gmra.mxu0 %v685
  %v753 = vpop.f32.mrf.mxu0
  %v754 = vadd.f32 0.0, %v753
  %v755 = vpop.f32.mrf.mxu0
  %756 = vdwg.mxu0
  %v757 = vadd.f32 %v170, %v754
  %v758 = vxor.u32 %v757, 2147483648
  %v759 = vmul.f32 %v758, 1.442695
  %v760 = vpow.pop %v759
  %v761 = vadd.f32 %v760, 1.0
  %v762 = vrcp.pop %v761
  %v763 = vmul.f32 1.0, %v762
  %v764 = vtanh.pop %v757
  %v765 = vmul.f32 %v763, %v675
  %767 = vrot.lane.b32.xlu0 %v764, 32
  %v768 = vpop.permute.xlu0 %767
  %v770 = vmul.f32 %v763, %v768
  %772 = vrot.lane.b32.xlu0 %v770, 32
  %v773 = vpop.permute.xlu0 %772
  %v775 = vadd.f32 %v765, %v773
  %v776 = vtanh.pop %v775
  %778 = vrot.lane.b32.xlu0 %v776, 32
  %v779 = vpop.permute.xlu0 %778
  %v781 = vmul.f32 %v763, %v779
  %783 = vrot.lane.b32.xlu0 %v781, 64
  %v784 = vpop.permute.xlu0 %783
  %v785 = vsel %vm183, %v784, 0
  %787 = vmatprep.subr.mxu0 0.0
  %788 = vmatpush1.msra.mxu0 0.0
  %789 = vmatprep.subr.mxu0 0.0
  %790 = vmatpush1.msra.mxu0 0.0
  %791 = vmatprep.subr.mxu0 0.0
  %792 = vmatpush1.msra.mxu0 0.0
  %793 = vmatprep.subr.mxu0 0.0
  %794 = vmatpush1.msra.mxu0 0.0
  %795 = vmatprep.subr.mxu0 0.0
  %796 = vmatpush1.msra.mxu0 0.0
  %797 = vmatprep.subr.mxu0 0.0
  %798 = vmatpush1.msra.mxu0 0.0
  %799 = vmatprep.subr.mxu0 0.0
  %800 = vmatpush1.msra.mxu0 0.0
  %801 = vmatprep.subr.mxu0 0.0
  %802 = vmatpush1.msra.mxu0 0.0
  %803 = vmatprep.subr.mxu0 0.0
  %804 = vmatpush1.msra.mxu0 0.0
  %805 = vmatprep.subr.mxu0 0.0
  %806 = vmatpush1.msra.mxu0 0.0
  %807 = vmatprep.subr.mxu0 0.0
  %808 = vmatpush1.msra.mxu0 0.0
  %809 = vmatprep.subr.mxu0 0.0
  %810 = vmatpush1.msra.mxu0 0.0
  %811 = vmatprep.subr.mxu0 0.0
  %812 = vmatpush1.msra.mxu0 %v45
  %813 = vmatprep.subr.mxu0 0.0
  %814 = vmatpush1.msra.mxu0 %v44
  %815 = vmatprep.subr.mxu0 0.0
  %816 = vmatpush1.msra.mxu0 %v43
  %817 = vmatprep.subr.mxu0 0.0
  %818 = vmatpush1.msra.mxu0 %v42
  %819 = vmatprep.subr.mxu0 0.0
  %820 = vmatpush2.msra.mxu0 0.0
  %821 = vmatprep.subr.mxu0 0.0
  %822 = vmatpush2.msra.mxu0 0.0
  %823 = vmatprep.subr.mxu0 0.0
  %824 = vmatpush2.msra.mxu0 0.0
  %825 = vmatprep.subr.mxu0 0.0
  %826 = vmatpush2.msra.mxu0 0.0
  %827 = vmatprep.subr.mxu0 0.0
  %828 = vmatpush2.msra.mxu0 0.0
  %829 = vmatprep.subr.mxu0 0.0
  %830 = vmatpush2.msra.mxu0 0.0
  %831 = vmatprep.subr.mxu0 0.0
  %832 = vmatpush2.msra.mxu0 0.0
  %833 = vmatprep.subr.mxu0 0.0
  %834 = vmatpush2.msra.mxu0 0.0
  %835 = vmatprep.subr.mxu0 0.0
  %836 = vmatpush2.msra.mxu0 0.0
  %837 = vmatprep.subr.mxu0 0.0
  %838 = vmatpush2.msra.mxu0 0.0
  %839 = vmatprep.subr.mxu0 0.0
  %840 = vmatpush2.msra.mxu0 0.0
  %841 = vmatprep.subr.mxu0 0.0
  %842 = vmatpush2.msra.mxu0 0.0
  %843 = vmatprep.subr.mxu0 0.0
  %844 = vmatpush2.msra.mxu0 0.0
  %845 = vmatprep.subr.mxu0 0.0
  %846 = vmatpush2.msra.mxu0 0.0
  %847 = vmatprep.subr.mxu0 0.0
  %848 = vmatpush2.msra.mxu0 0.0
  %849 = vmatprep.subr.mxu0 0.0
  %850 = vmatpush2.msra.mxu0 0.0
  %851 = vmatprep.mubr.f32.mxu0 0.0
  %852 = vmatmul.mubr.f32.gmra.mxu0 %v785
  %v853 = vpop.f32.mrf.mxu0
  %v854 = vadd.f32 0.0, %v853
  %v855 = vpop.f32.mrf.mxu0
  %856 = vdwg.mxu0
  %v857 = vadd.f32 %v175, %v854
  %v858 = vxor.u32 %v857, 2147483648
  %v859 = vmul.f32 %v858, 1.442695
  %v860 = vpow.pop %v859
  %v861 = vadd.f32 %v860, 1.0
  %v862 = vrcp.pop %v861
  %v863 = vmul.f32 1.0, %v862
  %v864 = vtanh.pop %v857
  %v865 = vmul.f32 %v863, %v775
  %867 = vrot.lane.b32.xlu0 %v864, 32
  %v868 = vpop.permute.xlu0 %867
  %v870 = vmul.f32 %v863, %v868
  %872 = vrot.lane.b32.xlu0 %v870, 32
  %v873 = vpop.permute.xlu0 %872
  %v875 = vadd.f32 %v865, %v873
  %v876 = vtanh.pop %v875
  %878 = vrot.lane.b32.xlu0 %v876, 32
  %v879 = vpop.permute.xlu0 %878
  %v881 = vmul.f32 %v863, %v879
  %883 = vrot.lane.b32.xlu0 %v881, 64
  %v884 = vpop.permute.xlu0 %883
  %v885 = vsel %vm183, %v884, 0
  %887 = vmatprep.subr.mxu0 0.0
  %888 = vmatpush1.msra.mxu0 0.0
  %889 = vmatprep.subr.mxu0 0.0
  %890 = vmatpush1.msra.mxu0 0.0
  %891 = vmatprep.subr.mxu0 0.0
  %892 = vmatpush1.msra.mxu0 0.0
  %893 = vmatprep.subr.mxu0 0.0
  %894 = vmatpush1.msra.mxu0 0.0
  %895 = vmatprep.subr.mxu0 0.0
  %896 = vmatpush1.msra.mxu0 0.0
  %897 = vmatprep.subr.mxu0 0.0
  %898 = vmatpush1.msra.mxu0 0.0
  %899 = vmatprep.subr.mxu0 0.0
  %900 = vmatpush1.msra.mxu0 0.0
  %901 = vmatprep.subr.mxu0 0.0
  %902 = vmatpush1.msra.mxu0 0.0
  %903 = vmatprep.subr.mxu0 0.0
  %904 = vmatpush1.msra.mxu0 0.0
  %905 = vmatprep.subr.mxu0 0.0
  %906 = vmatpush1.msra.mxu0 0.0
  %907 = vmatprep.subr.mxu0 0.0
  %908 = vmatpush1.msra.mxu0 0.0
  %909 = vmatprep.subr.mxu0 0.0
  %910 = vmatpush1.msra.mxu0 0.0
  %911 = vmatprep.subr.mxu0 0.0
  %912 = vmatpush1.msra.mxu0 %v45
  %913 = vmatprep.subr.mxu0 0.0
  %914 = vmatpush1.msra.mxu0 %v44
  %915 = vmatprep.subr.mxu0 0.0
  %916 = vmatpush1.msra.mxu0 %v43
  %917 = vmatprep.subr.mxu0 0.0
  %918 = vmatpush1.msra.mxu0 %v42
  %919 = vmatprep.subr.mxu0 0.0
  %920 = vmatpush2.msra.mxu0 0.0
  %921 = vmatprep.subr.mxu0 0.0
  %922 = vmatpush2.msra.mxu0 0.0
  %923 = vmatprep.subr.mxu0 0.0
  %924 = vmatpush2.msra.mxu0 0.0
  %925 = vmatprep.subr.mxu0 0.0
  %926 = vmatpush2.msra.mxu0 0.0
  %927 = vmatprep.subr.mxu0 0.0
  %928 = vmatpush2.msra.mxu0 0.0
  %929 = vmatprep.subr.mxu0 0.0
  %930 = vmatpush2.msra.mxu0 0.0
  %931 = vmatprep.subr.mxu0 0.0
  %932 = vmatpush2.msra.mxu0 0.0
  %933 = vmatprep.subr.mxu0 0.0
  %934 = vmatpush2.msra.mxu0 0.0
  %935 = vmatprep.subr.mxu0 0.0
  %936 = vmatpush2.msra.mxu0 0.0
  %937 = vmatprep.subr.mxu0 0.0
  %938 = vmatpush2.msra.mxu0 0.0
  %939 = vmatprep.subr.mxu0 0.0
  %940 = vmatpush2.msra.mxu0 0.0
  %941 = vmatprep.subr.mxu0 0.0
  %942 = vmatpush2.msra.mxu0 0.0
  %943 = vmatprep.subr.mxu0 0.0
  %944 = vmatpush2.msra.mxu0 0.0
  %945 = vmatprep.subr.mxu0 0.0
  %946 = vmatpush2.msra.mxu0 0.0
  %947 = vmatprep.subr.mxu0 0.0
  %948 = vmatpush2.msra.mxu0 0.0
  %949 = vmatprep.subr.mxu0 0.0
  %950 = vmatpush2.msra.mxu0 0.0
  %951 = vmatprep.mubr.f32.mxu0 0.0
  %952 = vmatmul.mubr.f32.gmra.mxu0 %v885
  %v953 = vpop.f32.mrf.mxu0
  %v954 = vadd.f32 0.0, %v953
  %v955 = vpop.f32.mrf.mxu0
  %956 = vdwg.mxu0
  %v957 = vadd.f32 %v180, %v954
  %v958 = vxor.u32 %v957, 2147483648
  %v959 = vmul.f32 %v958, 1.442695
  %v960 = vpow.pop %v959
  %v961 = vadd.f32 %v960, 1.0
  %v962 = vrcp.pop %v961
  %v963 = vmul.f32 1.0, %v962
  %v964 = vtanh.pop %v957
  %v965 = vmul.f32 %v963, %v875
  %967 = vrot.lane.b32.xlu0 %v964, 32
  %v968 = vpop.permute.xlu0 %967
  %v970 = vmul.f32 %v963, %v968
  %972 = vrot.lane.b32.xlu0 %v970, 32
  %v973 = vpop.permute.xlu0 %972
  %v975 = vadd.f32 %v965, %v973
  %v976 = vtanh.pop %v975
  %978 = vrot.lane.b32.xlu0 %v976, 32
  %v979 = vpop.permute.xlu0 %978
  %v981 = vmul.f32 %v963, %v979
  %v982 = vld [vmem:[%s4] sm:$0xff]
  %v983 = vld [vmem:[%s4 + $0x8] sm:$0xff]
  %v984 = vld [vmem:[%s4 + $0x10] sm:$0xff]
  %v985 = vld [vmem:[%s4 + $0x18] sm:$0xff]
  %v986 = vld [vmem:[%s5] sm:$0xff]
  %v987 = vld [vmem:[%s5 + $0x8] sm:$0xff]
  %v988 = vld [vmem:[%s5 + $0x10] sm:$0xff]
  %v989 = vld [vmem:[%s5 + $0x18] sm:$0xff]
  %v990 = vld [vmem:[%s6] sm:$0x1]
  %v992 = vlaneseq
  %v993 = vshrl.u32 %v992, 7
  %v994 = vsub.s32 0, %v993
  %v995 = vrot.slane %v990, %v994
  %998 = vrot.lane.b32.xlu0 %v981, 64
  %v999 = vpop.permute.xlu0 %998
  %v1000 = vsel %vm183, %v999, 0
  %1002 = vmatprep.subr.mxu0 0.0
  %1003 = vmatpush1.msra.mxu0 0.0
  %1004 = vmatprep.subr.mxu0 0.0
  %1005 = vmatpush1.msra.mxu0 0.0
  %1006 = vmatprep.subr.mxu0 0.0
  %1007 = vmatpush1.msra.mxu0 0.0
  %1008 = vmatprep.subr.mxu0 0.0
  %1009 = vmatpush1.msra.mxu0 0.0
  %1010 = vmatprep.subr.mxu0 0.0
  %1011 = vmatpush1.msra.mxu0 0.0
  %1012 = vmatprep.subr.mxu0 0.0
  %1013 = vmatpush1.msra.mxu0 0.0
  %1014 = vmatprep.subr.mxu0 0.0
  %1015 = vmatpush1.msra.mxu0 0.0
  %1016 = vmatprep.subr.mxu0 0.0
  %1017 = vmatpush1.msra.mxu0 0.0
  %1018 = vmatprep.subr.mxu0 0.0
  %1019 = vmatpush1.msra.mxu0 0.0
  %1020 = vmatprep.subr.mxu0 0.0
  %1021 = vmatpush1.msra.mxu0 0.0
  %1022 = vmatprep.subr.mxu0 0.0
  %1023 = vmatpush1.msra.mxu0 0.0
  %1024 = vmatprep.subr.mxu0 0.0
  %1025 = vmatpush1.msra.mxu0 0.0
  %1026 = vmatprep.subr.mxu0 0.0
  %1027 = vmatpush1.msra.mxu0 %v985
  %1028 = vmatprep.subr.mxu0 0.0
  %1029 = vmatpush1.msra.mxu0 %v984
  %1030 = vmatprep.subr.mxu0 0.0
  %1031 = vmatpush1.msra.mxu0 %v983
  %1032 = vmatprep.subr.mxu0 0.0
  %1033 = vmatpush1.msra.mxu0 %v982
  %1034 = vmatprep.subr.mxu0 0.0
  %1035 = vmatpush2.msra.mxu0 0.0
  %1036 = vmatprep.subr.mxu0 0.0
  %1037 = vmatpush2.msra.mxu0 0.0
  %1038 = vmatprep.subr.mxu0 0.0
  %1039 = vmatpush2.msra.mxu0 0.0
  %1040 = vmatprep.subr.mxu0 0.0
  %1041 = vmatpush2.msra.mxu0 0.0
  %1042 = vmatprep.subr.mxu0 0.0
  %1043 = vmatpush2.msra.mxu0 0.0
  %1044 = vmatprep.subr.mxu0 0.0
  %1045 = vmatpush2.msra.mxu0 0.0
  %1046 = vmatprep.subr.mxu0 0.0
  %1047 = vmatpush2.msra.mxu0 0.0
  %1048 = vmatprep.subr.mxu0 0.0
  %1049 = vmatpush2.msra.mxu0 0.0
  %1050 = vmatprep.subr.mxu0 0.0
  %1051 = vmatpush2.msra.mxu0 0.0
  %1052 = vmatprep.subr.mxu0 0.0
  %1053 = vmatpush2.msra.mxu0 0.0
  %1054 = vmatprep.subr.mxu0 0.0
  %1055 = vmatpush2.msra.mxu0 0.0
  %1056 = vmatprep.subr.mxu0 0.0
  %1057 = vmatpush2.msra.mxu0 0.0
  %1058 = vmatprep.subr.mxu0 0.0
  %1059 = vmatpush2.msra.mxu0 0.0
  %1060 = vmatprep.subr.mxu0 0.0
  %1061 = vmatpush2.msra.mxu0 0.0
  %1062 = vmatprep.subr.mxu0 0.0
  %1063 = vmatpush2.msra.mxu0 0.0
  %1064 = vmatprep.subr.mxu0 0.0
  %1065 = vmatpush2.msra.mxu0 0.0
  %1066 = vmatprep.mubr.f32.mxu0 0.0
  %1067 = vmatmul.mubr.f32.gmra.mxu0 %v285
  %v1068 = vpop.f32.mrf.mxu0
  %v1069 = vadd.f32 %v995, %v1068
  %v1070 = vpop.f32.mrf.mxu0
  %1071 = vmatprep.mubr.f32.mxu0 0.0
  %1072 = vmatmul.mubr.f32.gmra.mxu0 %v385
  %v1073 = vpop.f32.mrf.mxu0
  %v1074 = vadd.f32 %v995, %v1073
  %v1075 = vpop.f32.mrf.mxu0
  %1076 = vmatprep.mubr.f32.mxu0 0.0
  %1077 = vmatmul.mubr.f32.gmra.mxu0 %v485
  %v1078 = vpop.f32.mrf.mxu0
  %v1079 = vadd.f32 %v995, %v1078
  %v1080 = vpop.f32.mrf.mxu0
  %1081 = vmatprep.mubr.f32.mxu0 0.0
  %1082 = vmatmul.mubr.f32.gmra.mxu0 %v585
  %v1083 = vpop.f32.mrf.mxu0
  %v1084 = vadd.f32 %v995, %v1083
  %v1085 = vpop.f32.mrf.mxu0
  %1086 = vmatprep.mubr.f32.mxu0 0.0
  %1087 = vmatmul.mubr.f32.gmra.mxu0 %v685
  %v1088 = vpop.f32.mrf.mxu0
  %v1089 = vadd.f32 %v995, %v1088
  %v1090 = vpop.f32.mrf.mxu0
  %1091 = vmatprep.mubr.f32.mxu0 0.0
  %1092 = vmatmul.mubr.f32.gmra.mxu0 %v785
  %v1093 = vpop.f32.mrf.mxu0
  %v1094 = vadd.f32 %v995, %v1093
  %v1095 = vpop.f32.mrf.mxu0
  %1096 = vmatprep.mubr.f32.mxu0 0.0
  %1097 = vmatmul.mubr.f32.gmra.mxu0 %v885
  %v1098 = vpop.f32.mrf.mxu0
  %v1099 = vadd.f32 %v995, %v1098
  %v1100 = vpop.f32.mrf.mxu0
  %1101 = vmatprep.mubr.f32.mxu0 0.0
  %1102 = vmatmul.mubr.f32.gmra.mxu0 %v1000
  %v1103 = vpop.f32.mrf.mxu0
  %v1104 = vadd.f32 %v995, %v1103
  %v1105 = vpop.f32.mrf.mxu0
  %1106 = vdwg.mxu0
  %1107 = vmatprep.subr.mxu0 0.0
  %1108 = vmatpush1.msra.mxu0 0.0
  %1109 = vmatprep.subr.mxu0 0.0
  %1110 = vmatpush1.msra.mxu0 0.0
  %1111 = vmatprep.subr.mxu0 0.0
  %1112 = vmatpush1.msra.mxu0 0.0
  %1113 = vmatprep.subr.mxu0 0.0
  %1114 = vmatpush1.msra.mxu0 0.0
  %1115 = vmatprep.subr.mxu0 0.0
  %1116 = vmatpush1.msra.mxu0 0.0
  %1117 = vmatprep.subr.mxu0 0.0
  %1118 = vmatpush1.msra.mxu0 0.0
  %1119 = vmatprep.subr.mxu0 0.0
  %1120 = vmatpush1.msra.mxu0 0.0
  %1121 = vmatprep.subr.mxu0 0.0
  %1122 = vmatpush1.msra.mxu0 0.0
  %1123 = vmatprep.subr.mxu0 0.0
  %1124 = vmatpush1.msra.mxu0 0.0
  %1125 = vmatprep.subr.mxu0 0.0
  %1126 = vmatpush1.msra.mxu0 0.0
  %1127 = vmatprep.subr.mxu0 0.0
  %1128 = vmatpush1.msra.mxu0 0.0
  %1129 = vmatprep.subr.mxu0 0.0
  %1130 = vmatpush1.msra.mxu0 0.0
  %1131 = vmatprep.subr.mxu0 0.0
  %1132 = vmatpush1.msra.mxu0 %v989
  %1133 = vmatprep.subr.mxu0 0.0
  %1134 = vmatpush1.msra.mxu0 %v988
  %1135 = vmatprep.subr.mxu0 0.0
  %1136 = vmatpush1.msra.mxu0 %v987
  %1137 = vmatprep.subr.mxu0 0.0
  %1138 = vmatpush1.msra.mxu0 %v986
  %1139 = vmatprep.subr.mxu0 0.0
  %1140 = vmatpush2.msra.mxu0 0.0
  %1141 = vmatprep.subr.mxu0 0.0
  %1142 = vmatpush2.msra.mxu0 0.0
  %1143 = vmatprep.subr.mxu0 0.0
  %1144 = vmatpush2.msra.mxu0 0.0
  %1145 = vmatprep.subr.mxu0 0.0
  %1146 = vmatpush2.msra.mxu0 0.0
  %1147 = vmatprep.subr.mxu0 0.0
  %1148 = vmatpush2.msra.mxu0 0.0
  %1149 = vmatprep.subr.mxu0 0.0
  %1150 = vmatpush2.msra.mxu0 0.0
  %1151 = vmatprep.subr.mxu0 0.0
  %1152 = vmatpush2.msra.mxu0 0.0
  %1153 = vmatprep.subr.mxu0 0.0
  %1154 = vmatpush2.msra.mxu0 0.0
  %1155 = vmatprep.subr.mxu0 0.0
  %1156 = vmatpush2.msra.mxu0 0.0
  %1157 = vmatprep.subr.mxu0 0.0
  %1158 = vmatpush2.msra.mxu0 0.0
  %1159 = vmatprep.subr.mxu0 0.0
  %1160 = vmatpush2.msra.mxu0 0.0
  %1161 = vmatprep.subr.mxu0 0.0
  %1162 = vmatpush2.msra.mxu0 0.0
  %1163 = vmatprep.subr.mxu0 0.0
  %1164 = vmatpush2.msra.mxu0 0.0
  %1165 = vmatprep.subr.mxu0 0.0
  %1166 = vmatpush2.msra.mxu0 0.0
  %1167 = vmatprep.subr.mxu0 0.0
  %1168 = vmatpush2.msra.mxu0 0.0
  %1169 = vmatprep.subr.mxu0 0.0
  %1170 = vmatpush2.msra.mxu0 0.0
  %1171 = vmatprep.mubr.f32.mxu0 0.0
  %1172 = vmatmul.mubr.f32.gmra.mxu0 %v185
  %v1173 = vpop.f32.mrf.mxu0
  %v1174 = vadd.f32 0.0, %v1173
  %v1175 = vpop.f32.mrf.mxu0
  %1176 = vdwg.mxu0
  %v1177 = vadd.f32 %v1069, %v1174
  %v1178 = vxor.u32 %v1177, 2147483648
  %v1179 = vmul.f32 %v1178, 1.442695
  %v1180 = vpow.pop %v1179
  %v1181 = vadd.f32 %v1180, 1.0
  %v1182 = vrcp.pop %v1181
  %v1183 = vmul.f32 1.0, %v1182
  %v1184 = vtanh.pop %v1177
  %v1185 = vmul.f32 %v1183, 0.0
  %1187 = vrot.lane.b32.xlu0 %v1184, 32
  %v1188 = vpop.permute.xlu0 %1187
  %v1190 = vmul.f32 %v1183, %v1188
  %1192 = vrot.lane.b32.xlu0 %v1190, 32
  %v1193 = vpop.permute.xlu0 %1192
  %v1195 = vadd.f32 %v1185, %v1193
  %v1196 = vtanh.pop %v1195
  %1198 = vrot.lane.b32.xlu0 %v1196, 32
  %v1199 = vpop.permute.xlu0 %1198
  %v1201 = vmul.f32 %v1183, %v1199
  %1203 = vrot.lane.b32.xlu0 %v1201, 64
  %v1204 = vpop.permute.xlu0 %1203
  %v1205 = vsel %vm183, %v1204, 0
  %1207 = vmatprep.subr.mxu0 0.0
  %1208 = vmatpush1.msra.mxu0 0.0
  %1209 = vmatprep.subr.mxu0 0.0
  %1210 = vmatpush1.msra.mxu0 0.0
  %1211 = vmatprep.subr.mxu0 0.0
  %1212 = vmatpush1.msra.mxu0 0.0
  %1213 = vmatprep.subr.mxu0 0.0
  %1214 = vmatpush1.msra.mxu0 0.0
  %1215 = vmatprep.subr.mxu0 0.0
  %1216 = vmatpush1.msra.mxu0 0.0
  %1217 = vmatprep.subr.mxu0 0.0
  %1218 = vmatpush1.msra.mxu0 0.0
  %1219 = vmatprep.subr.mxu0 0.0
  %1220 = vmatpush1.msra.mxu0 0.0
  %1221 = vmatprep.subr.mxu0 0.0
  %1222 = vmatpush1.msra.mxu0 0.0
  %1223 = vmatprep.subr.mxu0 0.0
  %1224 = vmatpush1.msra.mxu0 0.0
  %1225 = vmatprep.subr.mxu0 0.0
  %1226 = vmatpush1.msra.mxu0 0.0
  %1227 = vmatprep.subr.mxu0 0.0
  %1228 = vmatpush1.msra.mxu0 0.0
  %1229 = vmatprep.subr.mxu0 0.0
  %1230 = vmatpush1.msra.mxu0 0.0
  %1231 = vmatprep.subr.mxu0 0.0
  %1232 = vmatpush1.msra.mxu0 %v989
  %1233 = vmatprep.subr.mxu0 0.0
  %1234 = vmatpush1.msra.mxu0 %v988
  %1235 = vmatprep.subr.mxu0 0.0
  %1236 = vmatpush1.msra.mxu0 %v987
  %1237 = vmatprep.subr.mxu0 0.0
  %1238 = vmatpush1.msra.mxu0 %v986
  %1239 = vmatprep.subr.mxu0 0.0
  %1240 = vmatpush2.msra.mxu0 0.0
  %1241 = vmatprep.subr.mxu0 0.0
  %1242 = vmatpush2.msra.mxu0 0.0
  %1243 = vmatprep.subr.mxu0 0.0
  %1244 = vmatpush2.msra.mxu0 0.0
  %1245 = vmatprep.subr.mxu0 0.0
  %1246 = vmatpush2.msra.mxu0 0.0
  %1247 = vmatprep.subr.mxu0 0.0
  %1248 = vmatpush2.msra.mxu0 0.0
  %1249 = vmatprep.subr.mxu0 0.0
  %1250 = vmatpush2.msra.mxu0 0.0
  %1251 = vmatprep.subr.mxu0 0.0
  %1252 = vmatpush2.msra.mxu0 0.0
  %1253 = vmatprep.subr.mxu0 0.0
  %1254 = vmatpush2.msra.mxu0 0.0
  %1255 = vmatprep.subr.mxu0 0.0
  %1256 = vmatpush2.msra.mxu0 0.0
  %1257 = vmatprep.subr.mxu0 0.0
  %1258 = vmatpush2.msra.mxu0 0.0
  %1259 = vmatprep.subr.mxu0 0.0
  %1260 = vmatpush2.msra.mxu0 0.0
  %1261 = vmatprep.subr.mxu0 0.0
  %1262 = vmatpush2.msra.mxu0 0.0
  %1263 = vmatprep.subr.mxu0 0.0
  %1264 = vmatpush2.msra.mxu0 0.0
  %1265 = vmatprep.subr.mxu0 0.0
  %1266 = vmatpush2.msra.mxu0 0.0
  %1267 = vmatprep.subr.mxu0 0.0
  %1268 = vmatpush2.msra.mxu0 0.0
  %1269 = vmatprep.subr.mxu0 0.0
  %1270 = vmatpush2.msra.mxu0 0.0
  %1271 = vmatprep.mubr.f32.mxu0 0.0
  %1272 = vmatmul.mubr.f32.gmra.mxu0 %v1205
  %v1273 = vpop.f32.mrf.mxu0
  %v1274 = vadd.f32 0.0, %v1273
  %v1275 = vpop.f32.mrf.mxu0
  %1276 = vdwg.mxu0
  %v1277 = vadd.f32 %v1074, %v1274
  %v1278 = vxor.u32 %v1277, 2147483648
  %v1279 = vmul.f32 %v1278, 1.442695
  %v1280 = vpow.pop %v1279
  %v1281 = vadd.f32 %v1280, 1.0
  %v1282 = vrcp.pop %v1281
  %v1283 = vmul.f32 1.0, %v1282
  %v1284 = vtanh.pop %v1277
  %v1285 = vmul.f32 %v1283, %v1195
  %1287 = vrot.lane.b32.xlu0 %v1284, 32
  %v1288 = vpop.permute.xlu0 %1287
  %v1290 = vmul.f32 %v1283, %v1288
  %1292 = vrot.lane.b32.xlu0 %v1290, 32
  %v1293 = vpop.permute.xlu0 %1292
  %v1295 = vadd.f32 %v1285, %v1293
  %v1296 = vtanh.pop %v1295
  %1298 = vrot.lane.b32.xlu0 %v1296, 32
  %v1299 = vpop.permute.xlu0 %1298
  %v1301 = vmul.f32 %v1283, %v1299
  %1303 = vrot.lane.b32.xlu0 %v1301, 64
  %v1304 = vpop.permute.xlu0 %1303
  %v1305 = vsel %vm183, %v1304, 0
  %1307 = vmatprep.subr.mxu0 0.0
  %1308 = vmatpush1.msra.mxu0 0.0
  %1309 = vmatprep.subr.mxu0 0.0
  %1310 = vmatpush1.msra.mxu0 0.0
  %1311 = vmatprep.subr.mxu0 0.0
  %1312 = vmatpush1.msra.mxu0 0.0
  %1313 = vmatprep.subr.mxu0 0.0
  %1314 = vmatpush1.msra.mxu0 0.0
  %1315 = vmatprep.subr.mxu0 0.0
  %1316 = vmatpush1.msra.mxu0 0.0
  %1317 = vmatprep.subr.mxu0 0.0
  %1318 = vmatpush1.msra.mxu0 0.0
  %1319 = vmatprep.subr.mxu0 0.0
  %1320 = vmatpush1.msra.mxu0 0.0
  %1321 = vmatprep.subr.mxu0 0.0
  %1322 = vmatpush1.msra.mxu0 0.0
  %1323 = vmatprep.subr.mxu0 0.0
  %1324 = vmatpush1.msra.mxu0 0.0
  %1325 = vmatprep.subr.mxu0 0.0
  %1326 = vmatpush1.msra.mxu0 0.0
  %1327 = vmatprep.subr.mxu0 0.0
  %1328 = vmatpush1.msra.mxu0 0.0
  %1329 = vmatprep.subr.mxu0 0.0
  %1330 = vmatpush1.msra.mxu0 0.0
  %1331 = vmatprep.subr.mxu0 0.0
  %1332 = vmatpush1.msra.mxu0 %v989
  %1333 = vmatprep.subr.mxu0 0.0
  %1334 = vmatpush1.msra.mxu0 %v988
  %1335 = vmatprep.subr.mxu0 0.0
  %1336 = vmatpush1.msra.mxu0 %v987
  %1337 = vmatprep.subr.mxu0 0.0
  %1338 = vmatpush1.msra.mxu0 %v986
  %1339 = vmatprep.subr.mxu0 0.0
  %1340 = vmatpush2.msra.mxu0 0.0
  %1341 = vmatprep.subr.mxu0 0.0
  %1342 = vmatpush2.msra.mxu0 0.0
  %1343 = vmatprep.subr.mxu0 0.0
  %1344 = vmatpush2.msra.mxu0 0.0
  %1345 = vmatprep.subr.mxu0 0.0
  %1346 = vmatpush2.msra.mxu0 0.0
  %1347 = vmatprep.subr.mxu0 0.0
  %1348 = vmatpush2.msra.mxu0 0.0
  %1349 = vmatprep.subr.mxu0 0.0
  %1350 = vmatpush2.msra.mxu0 0.0
  %1351 = vmatprep.subr.mxu0 0.0
  %1352 = vmatpush2.msra.mxu0 0.0
  %1353 = vmatprep.subr.mxu0 0.0
  %1354 = vmatpush2.msra.mxu0 0.0
  %1355 = vmatprep.subr.mxu0 0.0
  %1356 = vmatpush2.msra.mxu0 0.0
  %1357 = vmatprep.subr.mxu0 0.0
  %1358 = vmatpush2.msra.mxu0 0.0
  %1359 = vmatprep.subr.mxu0 0.0
  %1360 = vmatpush2.msra.mxu0 0.0
  %1361 = vmatprep.subr.mxu0 0.0
  %1362 = vmatpush2.msra.mxu0 0.0
  %1363 = vmatprep.subr.mxu0 0.0
  %1364 = vmatpush2.msra.mxu0 0.0
  %1365 = vmatprep.subr.mxu0 0.0
  %1366 = vmatpush2.msra.mxu0 0.0
  %1367 = vmatprep.subr.mxu0 0.0
  %1368 = vmatpush2.msra.mxu0 0.0
  %1369 = vmatprep.subr.mxu0 0.0
  %1370 = vmatpush2.msra.mxu0 0.0
  %1371 = vmatprep.mubr.f32.mxu0 0.0
  %1372 = vmatmul.mubr.f32.gmra.mxu0 %v1305
  %v1373 = vpop.f32.mrf.mxu0
  %v1374 = vadd.f32 0.0, %v1373
  %v1375 = vpop.f32.mrf.mxu0
  %1376 = vdwg.mxu0
  %v1377 = vadd.f32 %v1079, %v1374
  %v1378 = vxor.u32 %v1377, 2147483648
  %v1379 = vmul.f32 %v1378, 1.442695
  %v1380 = vpow.pop %v1379
  %v1381 = vadd.f32 %v1380, 1.0
  %v1382 = vrcp.pop %v1381
  %v1383 = vmul.f32 1.0, %v1382
  %v1384 = vtanh.pop %v1377
  %v1385 = vmul.f32 %v1383, %v1295
  %1387 = vrot.lane.b32.xlu0 %v1384, 32
  %v1388 = vpop.permute.xlu0 %1387
  %v1390 = vmul.f32 %v1383, %v1388
  %1392 = vrot.lane.b32.xlu0 %v1390, 32
  %v1393 = vpop.permute.xlu0 %1392
  %v1395 = vadd.f32 %v1385, %v1393
  %v1396 = vtanh.pop %v1395
  %1398 = vrot.lane.b32.xlu0 %v1396, 32
  %v1399 = vpop.permute.xlu0 %1398
  %v1401 = vmul.f32 %v1383, %v1399
  %1403 = vrot.lane.b32.xlu0 %v1401, 64
  %v1404 = vpop.permute.xlu0 %1403
  %v1405 = vsel %vm183, %v1404, 0
  %1407 = vmatprep.subr.mxu0 0.0
  %1408 = vmatpush1.msra.mxu0 0.0
  %1409 = vmatprep.subr.mxu0 0.0
  %1410 = vmatpush1.msra.mxu0 0.0
  %1411 = vmatprep.subr.mxu0 0.0
  %1412 = vmatpush1.msra.mxu0 0.0
  %1413 = vmatprep.subr.mxu0 0.0
  %1414 = vmatpush1.msra.mxu0 0.0
  %1415 = vmatprep.subr.mxu0 0.0
  %1416 = vmatpush1.msra.mxu0 0.0
  %1417 = vmatprep.subr.mxu0 0.0
  %1418 = vmatpush1.msra.mxu0 0.0
  %1419 = vmatprep.subr.mxu0 0.0
  %1420 = vmatpush1.msra.mxu0 0.0
  %1421 = vmatprep.subr.mxu0 0.0
  %1422 = vmatpush1.msra.mxu0 0.0
  %1423 = vmatprep.subr.mxu0 0.0
  %1424 = vmatpush1.msra.mxu0 0.0
  %1425 = vmatprep.subr.mxu0 0.0
  %1426 = vmatpush1.msra.mxu0 0.0
  %1427 = vmatprep.subr.mxu0 0.0
  %1428 = vmatpush1.msra.mxu0 0.0
  %1429 = vmatprep.subr.mxu0 0.0
  %1430 = vmatpush1.msra.mxu0 0.0
  %1431 = vmatprep.subr.mxu0 0.0
  %1432 = vmatpush1.msra.mxu0 %v989
  %1433 = vmatprep.subr.mxu0 0.0
  %1434 = vmatpush1.msra.mxu0 %v988
  %1435 = vmatprep.subr.mxu0 0.0
  %1436 = vmatpush1.msra.mxu0 %v987
  %1437 = vmatprep.subr.mxu0 0.0
  %1438 = vmatpush1.msra.mxu0 %v986
  %1439 = vmatprep.subr.mxu0 0.0
  %1440 = vmatpush2.msra.mxu0 0.0
  %1441 = vmatprep.subr.mxu0 0.0
  %1442 = vmatpush2.msra.mxu0 0.0
  %1443 = vmatprep.subr.mxu0 0.0
  %1444 = vmatpush2.msra.mxu0 0.0
  %1445 = vmatprep.subr.mxu0 0.0
  %1446 = vmatpush2.msra.mxu0 0.0
  %1447 = vmatprep.subr.mxu0 0.0
  %1448 = vmatpush2.msra.mxu0 0.0
  %1449 = vmatprep.subr.mxu0 0.0
  %1450 = vmatpush2.msra.mxu0 0.0
  %1451 = vmatprep.subr.mxu0 0.0
  %1452 = vmatpush2.msra.mxu0 0.0
  %1453 = vmatprep.subr.mxu0 0.0
  %1454 = vmatpush2.msra.mxu0 0.0
  %1455 = vmatprep.subr.mxu0 0.0
  %1456 = vmatpush2.msra.mxu0 0.0
  %1457 = vmatprep.subr.mxu0 0.0
  %1458 = vmatpush2.msra.mxu0 0.0
  %1459 = vmatprep.subr.mxu0 0.0
  %1460 = vmatpush2.msra.mxu0 0.0
  %1461 = vmatprep.subr.mxu0 0.0
  %1462 = vmatpush2.msra.mxu0 0.0
  %1463 = vmatprep.subr.mxu0 0.0
  %1464 = vmatpush2.msra.mxu0 0.0
  %1465 = vmatprep.subr.mxu0 0.0
  %1466 = vmatpush2.msra.mxu0 0.0
  %1467 = vmatprep.subr.mxu0 0.0
  %1468 = vmatpush2.msra.mxu0 0.0
  %1469 = vmatprep.subr.mxu0 0.0
  %1470 = vmatpush2.msra.mxu0 0.0
  %1471 = vmatprep.mubr.f32.mxu0 0.0
  %1472 = vmatmul.mubr.f32.gmra.mxu0 %v1405
  %v1473 = vpop.f32.mrf.mxu0
  %v1474 = vadd.f32 0.0, %v1473
  %v1475 = vpop.f32.mrf.mxu0
  %1476 = vdwg.mxu0
  %v1477 = vadd.f32 %v1084, %v1474
  %v1478 = vxor.u32 %v1477, 2147483648
  %v1479 = vmul.f32 %v1478, 1.442695
  %v1480 = vpow.pop %v1479
  %v1481 = vadd.f32 %v1480, 1.0
  %v1482 = vrcp.pop %v1481
  %v1483 = vmul.f32 1.0, %v1482
  %v1484 = vtanh.pop %v1477
  %v1485 = vmul.f32 %v1483, %v1395
  %1487 = vrot.lane.b32.xlu0 %v1484, 32
  %v1488 = vpop.permute.xlu0 %1487
  %v1490 = vmul.f32 %v1483, %v1488
  %1492 = vrot.lane.b32.xlu0 %v1490, 32
  %v1493 = vpop.permute.xlu0 %1492
  %v1495 = vadd.f32 %v1485, %v1493
  %v1496 = vtanh.pop %v1495
  %1498 = vrot.lane.b32.xlu0 %v1496, 32
  %v1499 = vpop.permute.xlu0 %1498
  %v1501 = vmul.f32 %v1483, %v1499
  %1503 = vrot.lane.b32.xlu0 %v1501, 64
  %v1504 = vpop.permute.xlu0 %1503
  %v1505 = vsel %vm183, %v1504, 0
  %1507 = vmatprep.subr.mxu0 0.0
  %1508 = vmatpush1.msra.mxu0 0.0
  %1509 = vmatprep.subr.mxu0 0.0
  %1510 = vmatpush1.msra.mxu0 0.0
  %1511 = vmatprep.subr.mxu0 0.0
  %1512 = vmatpush1.msra.mxu0 0.0
  %1513 = vmatprep.subr.mxu0 0.0
  %1514 = vmatpush1.msra.mxu0 0.0
  %1515 = vmatprep.subr.mxu0 0.0
  %1516 = vmatpush1.msra.mxu0 0.0
  %1517 = vmatprep.subr.mxu0 0.0
  %1518 = vmatpush1.msra.mxu0 0.0
  %1519 = vmatprep.subr.mxu0 0.0
  %1520 = vmatpush1.msra.mxu0 0.0
  %1521 = vmatprep.subr.mxu0 0.0
  %1522 = vmatpush1.msra.mxu0 0.0
  %1523 = vmatprep.subr.mxu0 0.0
  %1524 = vmatpush1.msra.mxu0 0.0
  %1525 = vmatprep.subr.mxu0 0.0
  %1526 = vmatpush1.msra.mxu0 0.0
  %1527 = vmatprep.subr.mxu0 0.0
  %1528 = vmatpush1.msra.mxu0 0.0
  %1529 = vmatprep.subr.mxu0 0.0
  %1530 = vmatpush1.msra.mxu0 0.0
  %1531 = vmatprep.subr.mxu0 0.0
  %1532 = vmatpush1.msra.mxu0 %v989
  %1533 = vmatprep.subr.mxu0 0.0
  %1534 = vmatpush1.msra.mxu0 %v988
  %1535 = vmatprep.subr.mxu0 0.0
  %1536 = vmatpush1.msra.mxu0 %v987
  %1537 = vmatprep.subr.mxu0 0.0
  %1538 = vmatpush1.msra.mxu0 %v986
  %1539 = vmatprep.subr.mxu0 0.0
  %1540 = vmatpush2.msra.mxu0 0.0
  %1541 = vmatprep.subr.mxu0 0.0
  %1542 = vmatpush2.msra.mxu0 0.0
  %1543 = vmatprep.subr.mxu0 0.0
  %1544 = vmatpush2.msra.mxu0 0.0
  %1545 = vmatprep.subr.mxu0 0.0
  %1546 = vmatpush2.msra.mxu0 0.0
  %1547 = vmatprep.subr.mxu0 0.0
  %1548 = vmatpush2.msra.mxu0 0.0
  %1549 = vmatprep.subr.mxu0 0.0
  %1550 = vmatpush2.msra.mxu0 0.0
  %1551 = vmatprep.subr.mxu0 0.0
  %1552 = vmatpush2.msra.mxu0 0.0
  %1553 = vmatprep.subr.mxu0 0.0
  %1554 = vmatpush2.msra.mxu0 0.0
  %1555 = vmatprep.subr.mxu0 0.0
  %1556 = vmatpush2.msra.mxu0 0.0
  %1557 = vmatprep.subr.mxu0 0.0
  %1558 = vmatpush2.msra.mxu0 0.0
  %1559 = vmatprep.subr.mxu0 0.0
  %1560 = vmatpush2.msra.mxu0 0.0
  %1561 = vmatprep.subr.mxu0 0.0
  %1562 = vmatpush2.msra.mxu0 0.0
  %1563 = vmatprep.subr.mxu0 0.0
  %1564 = vmatpush2.msra.mxu0 0.0
  %1565 = vmatprep.subr.mxu0 0.0
  %1566 = vmatpush2.msra.mxu0 0.0
  %1567 = vmatprep.subr.mxu0 0.0
  %1568 = vmatpush2.msra.mxu0 0.0
  %1569 = vmatprep.subr.mxu0 0.0
  %1570 = vmatpush2.msra.mxu0 0.0
  %1571 = vmatprep.mubr.f32.mxu0 0.0
  %1572 = vmatmul.mubr.f32.gmra.mxu0 %v1505
  %v1573 = vpop.f32.mrf.mxu0
  %v1574 = vadd.f32 0.0, %v1573
  %v1575 = vpop.f32.mrf.mxu0
  %1576 = vdwg.mxu0
  %v1577 = vadd.f32 %v1089, %v1574
  %v1578 = vxor.u32 %v1577, 2147483648
  %v1579 = vmul.f32 %v1578, 1.442695
  %v1580 = vpow.pop %v1579
  %v1581 = vadd.f32 %v1580, 1.0
  %v1582 = vrcp.pop %v1581
  %v1583 = vmul.f32 1.0, %v1582
  %v1584 = vtanh.pop %v1577
  %v1585 = vmul.f32 %v1583, %v1495
  %1587 = vrot.lane.b32.xlu0 %v1584, 32
  %v1588 = vpop.permute.xlu0 %1587
  %v1590 = vmul.f32 %v1583, %v1588
  %1592 = vrot.lane.b32.xlu0 %v1590, 32
  %v1593 = vpop.permute.xlu0 %1592
  %v1595 = vadd.f32 %v1585, %v1593
  %v1596 = vtanh.pop %v1595
  %1598 = vrot.lane.b32.xlu0 %v1596, 32
  %v1599 = vpop.permute.xlu0 %1598
  %v1601 = vmul.f32 %v1583, %v1599
  %1603 = vrot.lane.b32.xlu0 %v1601, 64
  %v1604 = vpop.permute.xlu0 %1603
  %v1605 = vsel %vm183, %v1604, 0
  %1607 = vmatprep.subr.mxu0 0.0
  %1608 = vmatpush1.msra.mxu0 0.0
  %1609 = vmatprep.subr.mxu0 0.0
  %1610 = vmatpush1.msra.mxu0 0.0
  %1611 = vmatprep.subr.mxu0 0.0
  %1612 = vmatpush1.msra.mxu0 0.0
  %1613 = vmatprep.subr.mxu0 0.0
  %1614 = vmatpush1.msra.mxu0 0.0
  %1615 = vmatprep.subr.mxu0 0.0
  %1616 = vmatpush1.msra.mxu0 0.0
  %1617 = vmatprep.subr.mxu0 0.0
  %1618 = vmatpush1.msra.mxu0 0.0
  %1619 = vmatprep.subr.mxu0 0.0
  %1620 = vmatpush1.msra.mxu0 0.0
  %1621 = vmatprep.subr.mxu0 0.0
  %1622 = vmatpush1.msra.mxu0 0.0
  %1623 = vmatprep.subr.mxu0 0.0
  %1624 = vmatpush1.msra.mxu0 0.0
  %1625 = vmatprep.subr.mxu0 0.0
  %1626 = vmatpush1.msra.mxu0 0.0
  %1627 = vmatprep.subr.mxu0 0.0
  %1628 = vmatpush1.msra.mxu0 0.0
  %1629 = vmatprep.subr.mxu0 0.0
  %1630 = vmatpush1.msra.mxu0 0.0
  %1631 = vmatprep.subr.mxu0 0.0
  %1632 = vmatpush1.msra.mxu0 %v989
  %1633 = vmatprep.subr.mxu0 0.0
  %1634 = vmatpush1.msra.mxu0 %v988
  %1635 = vmatprep.subr.mxu0 0.0
  %1636 = vmatpush1.msra.mxu0 %v987
  %1637 = vmatprep.subr.mxu0 0.0
  %1638 = vmatpush1.msra.mxu0 %v986
  %1639 = vmatprep.subr.mxu0 0.0
  %1640 = vmatpush2.msra.mxu0 0.0
  %1641 = vmatprep.subr.mxu0 0.0
  %1642 = vmatpush2.msra.mxu0 0.0
  %1643 = vmatprep.subr.mxu0 0.0
  %1644 = vmatpush2.msra.mxu0 0.0
  %1645 = vmatprep.subr.mxu0 0.0
  %1646 = vmatpush2.msra.mxu0 0.0
  %1647 = vmatprep.subr.mxu0 0.0
  %1648 = vmatpush2.msra.mxu0 0.0
  %1649 = vmatprep.subr.mxu0 0.0
  %1650 = vmatpush2.msra.mxu0 0.0
  %1651 = vmatprep.subr.mxu0 0.0
  %1652 = vmatpush2.msra.mxu0 0.0
  %1653 = vmatprep.subr.mxu0 0.0
  %1654 = vmatpush2.msra.mxu0 0.0
  %1655 = vmatprep.subr.mxu0 0.0
  %1656 = vmatpush2.msra.mxu0 0.0
  %1657 = vmatprep.subr.mxu0 0.0
  %1658 = vmatpush2.msra.mxu0 0.0
  %1659 = vmatprep.subr.mxu0 0.0
  %1660 = vmatpush2.msra.mxu0 0.0
  %1661 = vmatprep.subr.mxu0 0.0
  %1662 = vmatpush2.msra.mxu0 0.0
  %1663 = vmatprep.subr.mxu0 0.0
  %1664 = vmatpush2.msra.mxu0 0.0
  %1665 = vmatprep.subr.mxu0 0.0
  %1666 = vmatpush2.msra.mxu0 0.0
  %1667 = vmatprep.subr.mxu0 0.0
  %1668 = vmatpush2.msra.mxu0 0.0
  %1669 = vmatprep.subr.mxu0 0.0
  %1670 = vmatpush2.msra.mxu0 0.0
  %1671 = vmatprep.mubr.f32.mxu0 0.0
  %1672 = vmatmul.mubr.f32.gmra.mxu0 %v1605
  %v1673 = vpop.f32.mrf.mxu0
  %v1674 = vadd.f32 0.0, %v1673
  %v1675 = vpop.f32.mrf.mxu0
  %1676 = vdwg.mxu0
  %v1677 = vadd.f32 %v1094, %v1674
  %v1678 = vxor.u32 %v1677, 2147483648
  %v1679 = vmul.f32 %v1678, 1.442695
  %v1680 = vpow.pop %v1679
  %v1681 = vadd.f32 %v1680, 1.0
  %v1682 = vrcp.pop %v1681
  %v1683 = vmul.f32 1.0, %v1682
  %v1684 = vtanh.pop %v1677
  %v1685 = vmul.f32 %v1683, %v1595
  %1687 = vrot.lane.b32.xlu0 %v1684, 32
  %v1688 = vpop.permute.xlu0 %1687
  %v1690 = vmul.f32 %v1683, %v1688
  %1692 = vrot.lane.b32.xlu0 %v1690, 32
  %v1693 = vpop.permute.xlu0 %1692
  %v1695 = vadd.f32 %v1685, %v1693
  %v1696 = vtanh.pop %v1695
  %1698 = vrot.lane.b32.xlu0 %v1696, 32
  %v1699 = vpop.permute.xlu0 %1698
  %v1701 = vmul.f32 %v1683, %v1699
  %1703 = vrot.lane.b32.xlu0 %v1701, 64
  %v1704 = vpop.permute.xlu0 %1703
  %v1705 = vsel %vm183, %v1704, 0
  %1707 = vmatprep.subr.mxu0 0.0
  %1708 = vmatpush1.msra.mxu0 0.0
  %1709 = vmatprep.subr.mxu0 0.0
  %1710 = vmatpush1.msra.mxu0 0.0
  %1711 = vmatprep.subr.mxu0 0.0
  %1712 = vmatpush1.msra.mxu0 0.0
  %1713 = vmatprep.subr.mxu0 0.0
  %1714 = vmatpush1.msra.mxu0 0.0
  %1715 = vmatprep.subr.mxu0 0.0
  %1716 = vmatpush1.msra.mxu0 0.0
  %1717 = vmatprep.subr.mxu0 0.0
  %1718 = vmatpush1.msra.mxu0 0.0
  %1719 = vmatprep.subr.mxu0 0.0
  %1720 = vmatpush1.msra.mxu0 0.0
  %1721 = vmatprep.subr.mxu0 0.0
  %1722 = vmatpush1.msra.mxu0 0.0
  %1723 = vmatprep.subr.mxu0 0.0
  %1724 = vmatpush1.msra.mxu0 0.0
  %1725 = vmatprep.subr.mxu0 0.0
  %1726 = vmatpush1.msra.mxu0 0.0
  %1727 = vmatprep.subr.mxu0 0.0
  %1728 = vmatpush1.msra.mxu0 0.0
  %1729 = vmatprep.subr.mxu0 0.0
  %1730 = vmatpush1.msra.mxu0 0.0
  %1731 = vmatprep.subr.mxu0 0.0
  %1732 = vmatpush1.msra.mxu0 %v989
  %1733 = vmatprep.subr.mxu0 0.0
  %1734 = vmatpush1.msra.mxu0 %v988
  %1735 = vmatprep.subr.mxu0 0.0
  %1736 = vmatpush1.msra.mxu0 %v987
  %1737 = vmatprep.subr.mxu0 0.0
  %1738 = vmatpush1.msra.mxu0 %v986
  %1739 = vmatprep.subr.mxu0 0.0
  %1740 = vmatpush2.msra.mxu0 0.0
  %1741 = vmatprep.subr.mxu0 0.0
  %1742 = vmatpush2.msra.mxu0 0.0
  %1743 = vmatprep.subr.mxu0 0.0
  %1744 = vmatpush2.msra.mxu0 0.0
  %1745 = vmatprep.subr.mxu0 0.0
  %1746 = vmatpush2.msra.mxu0 0.0
  %1747 = vmatprep.subr.mxu0 0.0
  %1748 = vmatpush2.msra.mxu0 0.0
  %1749 = vmatprep.subr.mxu0 0.0
  %1750 = vmatpush2.msra.mxu0 0.0
  %1751 = vmatprep.subr.mxu0 0.0
  %1752 = vmatpush2.msra.mxu0 0.0
  %1753 = vmatprep.subr.mxu0 0.0
  %1754 = vmatpush2.msra.mxu0 0.0
  %1755 = vmatprep.subr.mxu0 0.0
  %1756 = vmatpush2.msra.mxu0 0.0
  %1757 = vmatprep.subr.mxu0 0.0
  %1758 = vmatpush2.msra.mxu0 0.0
  %1759 = vmatprep.subr.mxu0 0.0
  %1760 = vmatpush2.msra.mxu0 0.0
  %1761 = vmatprep.subr.mxu0 0.0
  %1762 = vmatpush2.msra.mxu0 0.0
  %1763 = vmatprep.subr.mxu0 0.0
  %1764 = vmatpush2.msra.mxu0 0.0
  %1765 = vmatprep.subr.mxu0 0.0
  %1766 = vmatpush2.msra.mxu0 0.0
  %1767 = vmatprep.subr.mxu0 0.0
  %1768 = vmatpush2.msra.mxu0 0.0
  %1769 = vmatprep.subr.mxu0 0.0
  %1770 = vmatpush2.msra.mxu0 0.0
  %1771 = vmatprep.mubr.f32.mxu0 0.0
  %1772 = vmatmul.mubr.f32.gmra.mxu0 %v1705
  %v1773 = vpop.f32.mrf.mxu0
  %v1774 = vadd.f32 0.0, %v1773
  %v1775 = vpop.f32.mrf.mxu0
  %1776 = vdwg.mxu0
  %v1777 = vadd.f32 %v1099, %v1774
  %v1778 = vxor.u32 %v1777, 2147483648
  %v1779 = vmul.f32 %v1778, 1.442695
  %v1780 = vpow.pop %v1779
  %v1781 = vadd.f32 %v1780, 1.0
  %v1782 = vrcp.pop %v1781
  %v1783 = vmul.f32 1.0, %v1782
  %v1784 = vtanh.pop %v1777
  %v1785 = vmul.f32 %v1783, %v1695
  %1787 = vrot.lane.b32.xlu0 %v1784, 32
  %v1788 = vpop.permute.xlu0 %1787
  %v1790 = vmul.f32 %v1783, %v1788
  %1792 = vrot.lane.b32.xlu0 %v1790, 32
  %v1793 = vpop.permute.xlu0 %1792
  %v1795 = vadd.f32 %v1785, %v1793
  %v1796 = vtanh.pop %v1795
  %1798 = vrot.lane.b32.xlu0 %v1796, 32
  %v1799 = vpop.permute.xlu0 %1798
  %v1801 = vmul.f32 %v1783, %v1799
  %1803 = vrot.lane.b32.xlu0 %v1801, 64
  %v1804 = vpop.permute.xlu0 %1803
  %v1805 = vsel %vm183, %v1804, 0
  %1807 = vmatprep.subr.mxu0 0.0
  %1808 = vmatpush1.msra.mxu0 0.0
  %1809 = vmatprep.subr.mxu0 0.0
  %1810 = vmatpush1.msra.mxu0 0.0
  %1811 = vmatprep.subr.mxu0 0.0
  %1812 = vmatpush1.msra.mxu0 0.0
  %1813 = vmatprep.subr.mxu0 0.0
  %1814 = vmatpush1.msra.mxu0 0.0
  %1815 = vmatprep.subr.mxu0 0.0
  %1816 = vmatpush1.msra.mxu0 0.0
  %1817 = vmatprep.subr.mxu0 0.0
  %1818 = vmatpush1.msra.mxu0 0.0
  %1819 = vmatprep.subr.mxu0 0.0
  %1820 = vmatpush1.msra.mxu0 0.0
  %1821 = vmatprep.subr.mxu0 0.0
  %1822 = vmatpush1.msra.mxu0 0.0
  %1823 = vmatprep.subr.mxu0 0.0
  %1824 = vmatpush1.msra.mxu0 0.0
  %1825 = vmatprep.subr.mxu0 0.0
  %1826 = vmatpush1.msra.mxu0 0.0
  %1827 = vmatprep.subr.mxu0 0.0
  %1828 = vmatpush1.msra.mxu0 0.0
  %1829 = vmatprep.subr.mxu0 0.0
  %1830 = vmatpush1.msra.mxu0 0.0
  %1831 = vmatprep.subr.mxu0 0.0
  %1832 = vmatpush1.msra.mxu0 %v989
  %1833 = vmatprep.subr.mxu0 0.0
  %1834 = vmatpush1.msra.mxu0 %v988
  %1835 = vmatprep.subr.mxu0 0.0
  %1836 = vmatpush1.msra.mxu0 %v987
  %1837 = vmatprep.subr.mxu0 0.0
  %1838 = vmatpush1.msra.mxu0 %v986
  %1839 = vmatprep.subr.mxu0 0.0
  %1840 = vmatpush2.msra.mxu0 0.0
  %1841 = vmatprep.subr.mxu0 0.0
  %1842 = vmatpush2.msra.mxu0 0.0
  %1843 = vmatprep.subr.mxu0 0.0
  %1844 = vmatpush2.msra.mxu0 0.0
  %1845 = vmatprep.subr.mxu0 0.0
  %1846 = vmatpush2.msra.mxu0 0.0
  %1847 = vmatprep.subr.mxu0 0.0
  %1848 = vmatpush2.msra.mxu0 0.0
  %1849 = vmatprep.subr.mxu0 0.0
  %1850 = vmatpush2.msra.mxu0 0.0
  %1851 = vmatprep.subr.mxu0 0.0
  %1852 = vmatpush2.msra.mxu0 0.0
  %1853 = vmatprep.subr.mxu0 0.0
  %1854 = vmatpush2.msra.mxu0 0.0
  %1855 = vmatprep.subr.mxu0 0.0
  %1856 = vmatpush2.msra.mxu0 0.0
  %1857 = vmatprep.subr.mxu0 0.0
  %1858 = vmatpush2.msra.mxu0 0.0
  %1859 = vmatprep.subr.mxu0 0.0
  %1860 = vmatpush2.msra.mxu0 0.0
  %1861 = vmatprep.subr.mxu0 0.0
  %1862 = vmatpush2.msra.mxu0 0.0
  %1863 = vmatprep.subr.mxu0 0.0
  %1864 = vmatpush2.msra.mxu0 0.0
  %1865 = vmatprep.subr.mxu0 0.0
  %1866 = vmatpush2.msra.mxu0 0.0
  %1867 = vmatprep.subr.mxu0 0.0
  %1868 = vmatpush2.msra.mxu0 0.0
  %1869 = vmatprep.subr.mxu0 0.0
  %1870 = vmatpush2.msra.mxu0 0.0
  %1871 = vmatprep.mubr.f32.mxu0 0.0
  %1872 = vmatmul.mubr.f32.gmra.mxu0 %v1805
  %v1873 = vpop.f32.mrf.mxu0
  %v1874 = vadd.f32 0.0, %v1873
  %v1875 = vpop.f32.mrf.mxu0
  %1876 = vdwg.mxu0
  %v1877 = vadd.f32 %v1104, %v1874
  %v1878 = vxor.u32 %v1877, 2147483648
  %v1879 = vmul.f32 %v1878, 1.442695
  %v1880 = vpow.pop %v1879
  %v1881 = vadd.f32 %v1880, 1.0
  %v1882 = vrcp.pop %v1881
  %v1883 = vmul.f32 1.0, %v1882
  %v1884 = vtanh.pop %v1877
  %v1885 = vmul.f32 %v1883, %v1795
  %1887 = vrot.lane.b32.xlu0 %v1884, 32
  %v1888 = vpop.permute.xlu0 %1887
  %v1890 = vmul.f32 %v1883, %v1888
  %1892 = vrot.lane.b32.xlu0 %v1890, 32
  %v1893 = vpop.permute.xlu0 %1892
  %v1895 = vadd.f32 %v1885, %v1893
  %v1896 = vtanh.pop %v1895
  %1898 = vrot.lane.b32.xlu0 %v1896, 32
  %v1899 = vpop.permute.xlu0 %1898
  %v1901 = vmul.f32 %v1883, %v1899
  %v1902 = vld [vmem:[%s7] sm:$0xff]
  %v1903 = vld [vmem:[%s7 + $0x8] sm:$0xff]
  %v1904 = vld [vmem:[%s7 + $0x10] sm:$0xff]
  %v1905 = vld [vmem:[%s7 + $0x18] sm:$0xff]
  %v1906 = vld [vmem:[%s8] sm:$0x1]
  %v1908 = vlaneseq
  %v1909 = vshrl.u32 %v1908, 7
  %v1910 = vsub.s32 0, %v1909
  %v1911 = vrot.slane %v1906, %v1910
  %1914 = vrot.lane.b32.xlu0 %v1901, 64
  %v1915 = vpop.permute.xlu0 %1914
  %v1916 = vsel %vm183, %v1915, 0
  %1918 = vmatprep.subr.mxu0 0.0
  %1919 = vmatpush1.msra.mxu0 0.0
  %1920 = vmatprep.subr.mxu0 0.0
  %1921 = vmatpush1.msra.mxu0 0.0
  %1922 = vmatprep.subr.mxu0 0.0
  %1923 = vmatpush1.msra.mxu0 0.0
  %1924 = vmatprep.subr.mxu0 0.0
  %1925 = vmatpush1.msra.mxu0 0.0
  %1926 = vmatprep.subr.mxu0 0.0
  %1927 = vmatpush1.msra.mxu0 0.0
  %1928 = vmatprep.subr.mxu0 0.0
  %1929 = vmatpush1.msra.mxu0 0.0
  %1930 = vmatprep.subr.mxu0 0.0
  %1931 = vmatpush1.msra.mxu0 0.0
  %1932 = vmatprep.subr.mxu0 0.0
  %1933 = vmatpush1.msra.mxu0 0.0
  %1934 = vmatprep.subr.mxu0 0.0
  %1935 = vmatpush1.msra.mxu0 0.0
  %1936 = vmatprep.subr.mxu0 0.0
  %1937 = vmatpush1.msra.mxu0 0.0
  %1938 = vmatprep.subr.mxu0 0.0
  %1939 = vmatpush1.msra.mxu0 0.0
  %1940 = vmatprep.subr.mxu0 0.0
  %1941 = vmatpush1.msra.mxu0 0.0
  %1942 = vmatprep.subr.mxu0 0.0
  %1943 = vmatpush1.msra.mxu0 %v1905
  %1944 = vmatprep.subr.mxu0 0.0
  %1945 = vmatpush1.msra.mxu0 %v1904
  %1946 = vmatprep.subr.mxu0 0.0
  %1947 = vmatpush1.msra.mxu0 %v1903
  %1948 = vmatprep.subr.mxu0 0.0
  %1949 = vmatpush1.msra.mxu0 %v1902
  %1950 = vmatprep.subr.mxu0 0.0
  %1951 = vmatpush2.msra.mxu0 0.0
  %1952 = vmatprep.subr.mxu0 0.0
  %1953 = vmatpush2.msra.mxu0 0.0
  %1954 = vmatprep.subr.mxu0 0.0
  %1955 = vmatpush2.msra.mxu0 0.0
  %1956 = vmatprep.subr.mxu0 0.0
  %1957 = vmatpush2.msra.mxu0 0.0
  %1958 = vmatprep.subr.mxu0 0.0
  %1959 = vmatpush2.msra.mxu0 0.0
  %1960 = vmatprep.subr.mxu0 0.0
  %1961 = vmatpush2.msra.mxu0 0.0
  %1962 = vmatprep.subr.mxu0 0.0
  %1963 = vmatpush2.msra.mxu0 0.0
  %1964 = vmatprep.subr.mxu0 0.0
  %1965 = vmatpush2.msra.mxu0 0.0
  %1966 = vmatprep.subr.mxu0 0.0
  %1967 = vmatpush2.msra.mxu0 0.0
  %1968 = vmatprep.subr.mxu0 0.0
  %1969 = vmatpush2.msra.mxu0 0.0
  %1970 = vmatprep.subr.mxu0 0.0
  %1971 = vmatpush2.msra.mxu0 0.0
  %1972 = vmatprep.subr.mxu0 0.0
  %1973 = vmatpush2.msra.mxu0 0.0
  %1974 = vmatprep.subr.mxu0 0.0
  %1975 = vmatpush2.msra.mxu0 0.0
  %1976 = vmatprep.subr.mxu0 0.0
  %1977 = vmatpush2.msra.mxu0 0.0
  %1978 = vmatprep.subr.mxu0 0.0
  %1979 = vmatpush2.msra.mxu0 0.0
  %1980 = vmatprep.subr.mxu0 0.0
  %1981 = vmatpush2.msra.mxu0 0.0
  %1982 = vmatprep.mubr.f32.mxu0 0.0
  %1983 = vmatmul.mubr.f32.gmra.mxu0 %v1205
  %v1984 = vpop.f32.mrf.mxu0
  %v1985 = vadd.f32 %v1911, %v1984
  %v1986 = vpop.f32.mrf.mxu0
  %1987 = vmatprep.mubr.f32.mxu0 0.0
  %1988 = vmatmul.mubr.f32.gmra.mxu0 %v1305
  %v1989 = vpop.f32.mrf.mxu0
  %v1990 = vadd.f32 %v1911, %v1989
  %v1991 = vpop.f32.mrf.mxu0
  %1992 = vmatprep.mubr.f32.mxu0 0.0
  %1993 = vmatmul.mubr.f32.gmra.mxu0 %v1405
  %v1994 = vpop.f32.mrf.mxu0
  %v1995 = vadd.f32 %v1911, %v1994
  %v1996 = vpop.f32.mrf.mxu0
  %1997 = vmatprep.mubr.f32.mxu0 0.0
  %1998 = vmatmul.mubr.f32.gmra.mxu0 %v1505
  %v1999 = vpop.f32.mrf.mxu0
  %v2000 = vadd.f32 %v1911, %v1999
  %v2001 = vpop.f32.mrf.mxu0
  %2002 = vmatprep.mubr.f32.mxu0 0.0
  %2003 = vmatmul.mubr.f32.gmra.mxu0 %v1605
  %v2004 = vpop.f32.mrf.mxu0
  %v2005 = vadd.f32 %v1911, %v2004
  %v2006 = vpop.f32.mrf.mxu0
  %2007 = vmatprep.mubr.f32.mxu0 0.0
  %2008 = vmatmul.mubr.f32.gmra.mxu0 %v1705
  %v2009 = vpop.f32.mrf.mxu0
  %v2010 = vadd.f32 %v1911, %v2009
  %v2011 = vpop.f32.mrf.mxu0
  %2012 = vmatprep.mubr.f32.mxu0 0.0
  %2013 = vmatmul.mubr.f32.gmra.mxu0 %v1805
  %v2014 = vpop.f32.mrf.mxu0
  %v2015 = vadd.f32 %v1911, %v2014
  %v2016 = vpop.f32.mrf.mxu0
  %2017 = vmatprep.mubr.f32.mxu0 0.0
  %2018 = vmatmul.mubr.f32.gmra.mxu0 %v1916
  %v2019 = vpop.f32.mrf.mxu0
  %v2020 = vadd.f32 %v1911, %v2019
  %v2021 = vpop.f32.mrf.mxu0
  %2022 = vdwg.mxu0
  %vm2023 = vcmask 64512
  %v2024 = vsel %vm2023, %v1985, -inf
  %2025 = vmax.xlane.f32.xlu0 %v2024
  %v2026 = vpop.xlane.xlu0 %2025
  %v2027 = vsel %vm2023, %v1990, -inf
  %2028 = vmax.xlane.f32.xlu0 %v2027
  %v2029 = vpop.xlane.xlu0 %2028
  %v2030 = vsel %vm2023, %v1995, -inf
  %2031 = vmax.xlane.f32.xlu0 %v2030
  %v2032 = vpop.xlane.xlu0 %2031
  %v2033 = vsel %vm2023, %v2000, -inf
  %2034 = vmax.xlane.f32.xlu0 %v2033
  %v2035 = vpop.xlane.xlu0 %2034
  %v2036 = vsel %vm2023, %v2005, -inf
  %2037 = vmax.xlane.f32.xlu0 %v2036
  %v2038 = vpop.xlane.xlu0 %2037
  %v2039 = vsel %vm2023, %v2010, -inf
  %2040 = vmax.xlane.f32.xlu0 %v2039
  %v2041 = vpop.xlane.xlu0 %2040
  %v2042 = vsel %vm2023, %v2015, -inf
  %2043 = vmax.xlane.f32.xlu0 %v2042
  %v2044 = vpop.xlane.xlu0 %2043
  %v2045 = vsel %vm2023, %v2020, -inf
  %2046 = vmax.xlane.f32.xlu0 %v2045
  %v2047 = vpop.xlane.xlu0 %2046
  %v2048 = vsub.f32 %v1985, %v2026
  %v2049 = vsub.f32 %v1990, %v2029
  %v2050 = vsub.f32 %v1995, %v2032
  %v2051 = vsub.f32 %v2000, %v2035
  %v2052 = vsub.f32 %v2005, %v2038
  %v2053 = vsub.f32 %v2010, %v2041
  %v2054 = vsub.f32 %v2015, %v2044
  %v2055 = vsub.f32 %v2020, %v2047
  %v2056 = vmul.f32 %v2048, 1.442695
  %v2057 = vpow.pop %v2056
  %v2058 = vmul.f32 %v2049, 1.442695
  %v2059 = vpow.pop %v2058
  %v2060 = vmul.f32 %v2050, 1.442695
  %v2061 = vpow.pop %v2060
  %v2062 = vmul.f32 %v2051, 1.442695
  %v2063 = vpow.pop %v2062
  %v2064 = vmul.f32 %v2052, 1.442695
  %v2065 = vpow.pop %v2064
  %v2066 = vmul.f32 %v2053, 1.442695
  %v2067 = vpow.pop %v2066
  %v2068 = vmul.f32 %v2054, 1.442695
  %v2069 = vpow.pop %v2068
  %v2070 = vmul.f32 %v2055, 1.442695
  %v2071 = vpow.pop %v2070
  %v2072 = vsel %vm2023, %v2057, 0.0
  %2073 = vadd.xlane.f32.xlu0 %v2072
  %v2074 = vpop.xlane.xlu0 %2073
  %v2075 = vsel %vm2023, %v2059, 0.0
  %2076 = vadd.xlane.f32.xlu0 %v2075
  %v2077 = vpop.xlane.xlu0 %2076
  %v2078 = vsel %vm2023, %v2061, 0.0
  %2079 = vadd.xlane.f32.xlu0 %v2078
  %v2080 = vpop.xlane.xlu0 %2079
  %v2081 = vsel %vm2023, %v2063, 0.0
  %2082 = vadd.xlane.f32.xlu0 %v2081
  %v2083 = vpop.xlane.xlu0 %2082
  %v2084 = vsel %vm2023, %v2065, 0.0
  %2085 = vadd.xlane.f32.xlu0 %v2084
  %v2086 = vpop.xlane.xlu0 %2085
  %v2087 = vsel %vm2023, %v2067, 0.0
  %2088 = vadd.xlane.f32.xlu0 %v2087
  %v2089 = vpop.xlane.xlu0 %2088
  %v2090 = vsel %vm2023, %v2069, 0.0
  %2091 = vadd.xlane.f32.xlu0 %v2090
  %v2092 = vpop.xlane.xlu0 %2091
  %v2093 = vsel %vm2023, %v2071, 0.0
  %2094 = vadd.xlane.f32.xlu0 %v2093
  %v2095 = vpop.xlane.xlu0 %2094
  %v2096 = vrcp.pop %v2074
  %v2097 = vmul.f32 %v2057, %v2096
  %v2098 = vrcp.pop %v2077
  %v2099 = vmul.f32 %v2059, %v2098
  %v2100 = vrcp.pop %v2080
  %v2101 = vmul.f32 %v2061, %v2100
  %v2102 = vrcp.pop %v2083
  %v2103 = vmul.f32 %v2063, %v2102
  %v2104 = vrcp.pop %v2086
  %v2105 = vmul.f32 %v2065, %v2104
  %v2106 = vrcp.pop %v2089
  %v2107 = vmul.f32 %v2067, %v2106
  %v2108 = vrcp.pop %v2092
  %v2109 = vmul.f32 %v2069, %v2108
  %v2110 = vrcp.pop %v2095
  %v2111 = vmul.f32 %v2071, %v2110
  %2112 = vst.msk [vmem:[%s9] sm:$0xff] %vm2023, %v2097
  %2113 = vst.msk [vmem:[%s9 + $0x8] sm:$0xff] %vm2023, %v2099
  %2114 = vst.msk [vmem:[%s9 + $0x10] sm:$0xff] %vm2023, %v2101
  %2115 = vst.msk [vmem:[%s9 + $0x18] sm:$0xff] %vm2023, %v2103
  %2116 = vst.msk [vmem:[%s9 + $0x20] sm:$0xff] %vm2023, %v2105
  %2117 = vst.msk [vmem:[%s9 + $0x28] sm:$0xff] %vm2023, %v2107
  %2118 = vst.msk [vmem:[%s9 + $0x30] sm:$0xff] %vm2023, %v2109
  %2119 = vst.msk [vmem:[%s9 + $0x38] sm:$0xff] %vm2023, %v2111
  // Predicated region
  $region38: #{tpu_custom_call.1} parent=0 // pred_check
    _
  $region39: #{tpu_custom_call.1} parent=0 // pred_check_branch
    %2121 = sbr.rel (0) target = $region41
  $region40: #{tpu_custom_call.1} parent=0 // pred_region
    _
  $region41: #{tpu_custom_call.1} parent=0 // pred_fallthru
    _
  // Predicated region
  $region42: #{tpu_custom_call.1} parent=0 // pred_check
    _
  $region43: #{tpu_custom_call.1} parent=0 // pred_check_branch
    %2123 = sbr.rel (0) target = $region45
  $region44: #{tpu_custom_call.1} parent=0 // pred_region
    _
  $region45: #{tpu_custom_call.1} parent=0 // pred_fallthru
    _

</llo_original>
